<compile_context>
chip_gen: v5e
topology: v5e:2x2
jax: 0.10.0
libtpu: 0.0.40
codegen_flags: <defaults>
</compile_context>

<pallas_src>
import functools

import jax
import jax.numpy as jnp
from jax import lax
from jax.experimental import pallas as pl
from jax.experimental.pallas import tpu as pltpu

LN_EPS = 1e-5          # nn.LayerNorm default
MASK_NEG = -1e9        # finite "minus infinity" for key_padding_mask


# ----------------------------------------------------------------------------
# Fused encoder-layer kernel (one batch-block per grid step)
# ----------------------------------------------------------------------------
def _layer_kernel(tok_ref, pos_ref, bias_ref,
                  wqk_ref, bqk_ref, wv_ref, bv_ref, wo_ref, bo_ref,
                  ln1g_ref, ln1b_ref, w1_ref, b1_ref, w2_ref, b2_ref,
                  ln2g_ref, ln2b_ref,
                  out_ref,
                  *, nhead, head_dim):
    """tok/pos: (Bt, S, D); bias: (Bt, 1, S); weights pre-packed (in, out) bf16.
    1/sqrt(head_dim) is already folded into the Q half of w_qk / b_qk."""
    bt, s_len, d = tok_ref.shape
    bf16 = jnp.bfloat16

    x = tok_ref[...].astype(jnp.float32)          # (Bt, S, D) residual / value
    xp = x + pos_ref[...].astype(jnp.float32)     # q = k = tokens + pos
    x2 = x.reshape(bt * s_len, d)
    xp2 = xp.reshape(bt * s_len, d)

    def layer_norm(y, g_ref, b_ref):
        mean = jnp.mean(y, axis=-1, keepdims=True)
        cen = y - mean
        var = jnp.mean(cen * cen, axis=-1, keepdims=True)
        return cen * lax.rsqrt(var + LN_EPS) * g_ref[...] + b_ref[...]

    # ---- packed QK projection + V projection (bf16 MXU, f32 accumulate) ----
    qk = jnp.dot(xp2.astype(bf16), wqk_ref[...],
                 preferred_element_type=jnp.float32) + bqk_ref[...]   # (BtS, 2D)
    v = jnp.dot(x2.astype(bf16), wv_ref[...],
                preferred_element_type=jnp.float32) + bv_ref[...]     # (BtS, D)

    qk3 = qk.astype(bf16).reshape(bt, s_len, 2 * d)
    v3 = v.astype(bf16).reshape(bt, s_len, d)

    # key-mask bias broadcast ONCE (JAX does not CSE broadcast_in_dim)
    bias = jnp.broadcast_to(bias_ref[...], (bt, s_len, s_len))        # (Bt,S,S)

    # ---- per-head attention on vreg-resident values (batched over Bt) ------
    head_outs = []
    for h in range(nhead):                        # static unroll, H is small
        lo = h * head_dim
        q_h = qk3[:, :, lo:lo + head_dim]               # (Bt, S, Dh)
        k_h = qk3[:, :, d + lo:d + lo + head_dim]       # (Bt, S, Dh)
        v_h = v3[:, :, lo:lo + head_dim]                # (Bt, S, Dh)
        s = jnp.einsum("bqd,bkd->bqk", q_h, k_h,
                       preferred_element_type=jnp.float32)            # (Bt,S,S)
        s = s + bias
        s = s - jnp.max(s, axis=-1, keepdims=True)
        p = jnp.exp(s)
        p = p * pl.reciprocal(jnp.sum(p, axis=-1, keepdims=True), approx=True)
        head_outs.append(
            jnp.einsum("bqk,bkd->bqd", p.astype(bf16), v_h,
                       preferred_element_type=jnp.float32))           # (Bt,S,Dh)
    attn = jnp.concatenate(head_outs, axis=-1).reshape(bt * s_len, d)

    # ---- out-projection + residual + LayerNorm1 (post-norm) ----------------
    a = jnp.dot(attn.astype(bf16), wo_ref[...],
                preferred_element_type=jnp.float32) + bo_ref[...]
    t1 = layer_norm(x2 + a, ln1g_ref, ln1b_ref)

    # ---- fused MLP (hidden never leaves VMEM) + residual + LayerNorm2 -------
    h1 = jnp.maximum(
        jnp.dot(t1.astype(bf16), w1_ref[...],
                preferred_element_type=jnp.float32) + b1_ref[...], 0.0)  # (BtS, 8D)
    m = jnp.dot(h1.astype(bf16), w2_ref[...],
                preferred_element_type=jnp.float32) + b2_ref[...]
    t2 = layer_norm(t1 + m, ln2g_ref, ln2b_ref)
    out_ref[...] = t2.reshape(bt, s_len, d).astype(out_ref.dtype)


def _const_spec(shape):
    """Grid-invariant block (weights / biases / LN params).

    Same block every grid step, so single-buffer it: the second pipeline
    buffer would only burn VMEM (the binding constraint at production D/F on
    v7x's 64 MiB VMEM)."""
    return pl.BlockSpec(shape, lambda b: (0,) * len(shape),
                        pipeline_mode=pl.Buffered(1))


def transformer_layer(tokens, pos, bias, p, nhead, batch_block=None):
    """One fused encoder layer.  tokens/pos: (B, S, D); bias: (B, 1, S)."""
    B, S, D = tokens.shape
    F = p["w1"].shape[1]
    Dh = D // nhead
    bt = B if batch_block is None else batch_block
    assert B % bt == 0

    tok_map = lambda b: (b, 0, 0)
    kernel = functools.partial(_layer_kernel, nhead=nhead, head_dim=Dh)

    return pl.pallas_call(
        kernel,
        grid=(B // bt,),
        in_specs=[
            pl.BlockSpec((bt, S, D), tok_map),           # tokens
            pl.BlockSpec((bt, S, D), tok_map),           # pos
            pl.BlockSpec((bt, 1, S), tok_map),           # key-mask bias
            _const_spec((D, 2 * D)),                     # w_qk (packed, scaled)
            _const_spec((1, 2 * D)),                     # b_qk
            _const_spec((D, D)),                         # w_v
            _const_spec((1, D)),                         # b_v
            _const_spec((D, D)),                         # w_o
            _const_spec((1, D)),                         # b_o
            _const_spec((1, D)),                         # ln1_g
            _const_spec((1, D)),                         # ln1_b
            _const_spec((D, F)),                         # w1
            _const_spec((1, F)),                         # b1
            _const_spec((F, D)),                         # w2
            _const_spec((1, D)),                         # b2
            _const_spec((1, D)),                         # ln2_g
            _const_spec((1, D)),                         # ln2_b
        ],
        out_specs=pl.BlockSpec((bt, S, D), tok_map),
        out_shape=jax.ShapeDtypeStruct((B, S, D), tokens.dtype),
        compiler_params=pltpu.CompilerParams(
            dimension_semantics=("parallel",),
            vmem_limit_bytes=32 * 1024 * 1024),
    )(tokens, pos, bias,
      p["w_qk"], p["b_qk"], p["w_v"], p["b_v"], p["w_o"], p["b_o"],
      p["ln1_g"], p["ln1_b"], p["w1"], p["b1"], p["w2"], p["b2"],
      p["ln2_g"], p["ln2_b"])


# ----------------------------------------------------------------------------
# Parameters: synthetic PyTorch-layout init, packed ONCE into kernel layout
# ----------------------------------------------------------------------------
def init_layer_params_torch(key, d_model, dim_feedforward):
    """Deterministic synthetic params in PyTorch (out, in) layout."""
    k0, k1, k2, k3 = jax.random.split(key, 4)
    s = 0.02
    return dict(
        in_proj_w=jax.random.normal(k0, (3 * d_model, d_model), jnp.float32) * s,
        in_proj_b=jnp.zeros((3 * d_model,), jnp.float32),
        out_proj_w=jax.random.normal(k1, (d_model, d_model), jnp.float32) * s,
        out_proj_b=jnp.zeros((d_model,), jnp.float32),
        w1=jax.random.normal(k2, (dim_feedforward, d_model), jnp.float32) * s,
        b1=jnp.zeros((dim_feedforward,), jnp.float32),
        w2=jax.random.normal(k3, (d_model, dim_feedforward), jnp.float32) * s,
        b2=jnp.zeros((d_model,), jnp.float32),
        ln1_g=jnp.ones((d_model,), jnp.float32),
        ln1_b=jnp.zeros((d_model,), jnp.float32),
        ln2_g=jnp.ones((d_model,), jnp.float32),
        ln2_b=jnp.zeros((d_model,), jnp.float32),
    )


def pack_layer_params(tp, d_model, dim_feedforward, nhead):
    """One-time conversion: pre-transpose to (in, out), pack Q|K, fold the
    1/sqrt(Dh) attention scale into the Q projection, store weights in bf16."""
    D, F = d_model, dim_feedforward
    scale = 1.0 / float(D // nhead) ** 0.5
    bf16 = jnp.bfloat16
    wq, wk, wv = jnp.split(tp["in_proj_w"], 3, axis=0)
    bq, bk, bv = jnp.split(tp["in_proj_b"], 3, axis=0)
    return dict(
        w_qk=jnp.concatenate([wq.T * scale, wk.T], axis=1).astype(bf16),  # (D,2D)
        b_qk=jnp.concatenate([bq * scale, bk]).reshape(1, 2 * D),
        w_v=wv.T.astype(bf16), b_v=bv.reshape(1, D),
        w_o=tp["out_proj_w"].T.astype(bf16), b_o=tp["out_proj_b"].reshape(1, D),
        w1=tp["w1"].T.astype(bf16), b1=tp["b1"].reshape(1, F),            # (D,F)
        w2=tp["w2"].T.astype(bf16), b2=tp["b2"].reshape(1, D),            # (F,D)
        ln1_g=tp["ln1_g"].reshape(1, D), ln1_b=tp["ln1_b"].reshape(1, D),
        ln2_g=tp["ln2_g"].reshape(1, D), ln2_b=tp["ln2_b"].reshape(1, D),
    )


# ----------------------------------------------------------------------------
# Encoder forward
# ----------------------------------------------------------------------------
def _key_mask_bias(key_mask, B, S):
    if key_mask is None:
        return jnp.zeros((B, 1, S), jnp.float32)
    # True entries are ignored (PyTorch key_padding_mask semantics); finite
    # MASK_NEG so an all-masked row cannot NaN.
    return jnp.where(key_mask[:, None, :], MASK_NEG, 0.0).astype(jnp.float32)


def transformer_encoder(tokens, pos, packed_params_list, nhead,
                        key_mask=None, batch_block=None):
    B, S, _ = tokens.shape
    bias = _key_mask_bias(key_mask, B, S)
    for p in packed_params_list:
        tokens = transformer_layer(tokens, pos, bias, p, nhead,
                                   batch_block=batch_block)
    return tokens


# ----------------------------------------------------------------------------
# Pure-JAX reference (same math, f32 activations) for correctness checks
# ----------------------------------------------------------------------------
def _reference_layer(tokens, pos, bias, p, nhead):
    B, S, D = tokens.shape
    Dh = D // nhead
    f32 = jnp.float32
    xp = tokens + pos
    qk = xp @ p["w_qk"].astype(f32) + p["b_qk"]
    q, k = qk[..., :D], qk[..., D:]           # scale already folded into w_qk
    v = tokens @ p["w_v"].astype(f32) + p["b_v"]
    heads = lambda t: t.reshape(B, S, nhead, Dh).transpose(0, 2, 1, 3)
    qh, kh, vh = heads(q), heads(k), heads(v)
    s = jnp.einsum("bhqd,bhkd->bhqk", qh, kh) + bias[:, None, :, :]
    pa = jax.nn.softmax(s, axis=-1)
    o = jnp.einsum("bhqk,bhkd->bhqd", pa, vh).transpose(0, 2, 1, 3).reshape(B, S, D)
    o = o @ p["w_o"].astype(f32) + p["b_o"]

    def ln(y, g, b):
        m = y.mean(-1, keepdims=True)
        var = ((y - m) ** 2).mean(-1, keepdims=True)
        return (y - m) / jnp.sqrt(var + LN_EPS) * g + b

    t1 = ln(tokens + o, p["ln1_g"], p["ln1_b"])
    h = jnp.maximum(t1 @ p["w1"].astype(f32) + p["b1"], 0.0)
    return ln(t1 + (h @ p["w2"].astype(f32) + p["b2"]), p["ln2_g"], p["ln2_b"])


def _reference_encoder(tokens, pos, packed_params_list, nhead, key_mask=None):
    B, S, _ = tokens.shape
    bias = _key_mask_bias(key_mask, B, S)
    for p in packed_params_list:
        tokens = _reference_layer(tokens, pos, bias, p, nhead)
    return tokens


# ----------------------------------------------------------------------------
if __name__ == "__main__":
    B, S, D, H = 2, 8, 32, 8      # batch, seq, d_model, nhead
    num_layers = 2                # TransformerEncoder(d_model=32, num_encoder_layers=2, nhead=8)
    dff = 8 * D                   # TransformerLayer default dim_feedforward

    key = jax.random.PRNGKey(0)
    k_tok, k_pos, k_params = jax.random.split(key, 3)
    tokens = jax.random.normal(k_tok, (B, S, D), jnp.float32)
    pos = jax.random.normal(k_pos, (B, S, D), jnp.float32)

    layer_keys = jax.random.split(k_params, num_layers)
    params_list = [
        pack_layer_params(init_layer_params_torch(k, D, dff), D, dff, H)
        for k in layer_keys
    ]

    # --- unmasked path -------------------------------------------------------
    out = transformer_encoder(tokens, pos, params_list, H, key_mask=None)
    out = jax.block_until_ready(out)
    assert out.shape == (B, S, D) and out.dtype == jnp.float32
    ref = jax.block_until_ready(_reference_encoder(tokens, pos, params_list, H))
    max_err = float(jnp.max(jnp.abs(out - ref)))
    assert max_err < 5e-2, f"unmasked mismatch vs reference: {max_err}"

    # --- key_padding_mask path (no row fully masked) -------------------------
    key_mask = jnp.zeros((B, S), dtype=bool).at[:, S - 2:].set(True)
    out_m = jax.block_until_ready(
        transformer_encoder(tokens, pos, params_list, H, key_mask=key_mask))
    ref_m = jax.block_until_ready(
        _reference_encoder(tokens, pos, params_list, H, key_mask=key_mask))
    max_err_m = float(jnp.max(jnp.abs(out_m - ref_m)))
    assert max_err_m < 5e-2, f"masked mismatch vs reference: {max_err_m}"

    print("KERNEL_OK")
</pallas_src>

<mosaic_0001>
module attributes {stable_mosaic.version = 11 : i64} {
  func.func @_layer_kernel(%arg0: i32, %arg1: memref<2x8x32xf32, #tpu.memory_space<vmem>>, %arg2: memref<2x8x32xf32, #tpu.memory_space<vmem>>, %arg3: memref<2x1x8xf32, #tpu.memory_space<vmem>>, %arg4: memref<32x64xbf16, #tpu.memory_space<vmem>>, %arg5: memref<1x64xf32, #tpu.memory_space<vmem>>, %arg6: memref<32x32xbf16, #tpu.memory_space<vmem>>, %arg7: memref<1x32xf32, #tpu.memory_space<vmem>>, %arg8: memref<32x32xbf16, #tpu.memory_space<vmem>>, %arg9: memref<1x32xf32, #tpu.memory_space<vmem>>, %arg10: memref<1x32xf32, #tpu.memory_space<vmem>>, %arg11: memref<1x32xf32, #tpu.memory_space<vmem>>, %arg12: memref<32x256xbf16, #tpu.memory_space<vmem>>, %arg13: memref<1x256xf32, #tpu.memory_space<vmem>>, %arg14: memref<256x32xbf16, #tpu.memory_space<vmem>>, %arg15: memref<1x32xf32, #tpu.memory_space<vmem>>, %arg16: memref<1x32xf32, #tpu.memory_space<vmem>>, %arg17: memref<1x32xf32, #tpu.memory_space<vmem>>, %arg18: memref<2x8x32xf32, #tpu.memory_space<vmem>>) attributes {dimension_semantics = [#tpu.dimension_semantics<parallel>], iteration_bounds = array<i64: 1>, scalar_prefetch = 0 : i64, scratch_operands = 0 : i64, tpu.core_type = #tpu.core_type<tc>, window_params = [{transform_indices = @transform_0, window_bounds = array<i64: 2, 8, 32>}, {transform_indices = @transform_1, window_bounds = array<i64: 2, 8, 32>}, {transform_indices = @transform_2, window_bounds = array<i64: 2, 1, 8>}, {pipeline_mode = #tpu.pipeline_mode<synchronous>, transform_indices = @transform_3, window_bounds = array<i64: 32, 64>}, {pipeline_mode = #tpu.pipeline_mode<synchronous>, transform_indices = @transform_4, window_bounds = array<i64: 1, 64>}, {pipeline_mode = #tpu.pipeline_mode<synchronous>, transform_indices = @transform_5, window_bounds = array<i64: 32, 32>}, {pipeline_mode = #tpu.pipeline_mode<synchronous>, transform_indices = @transform_6, window_bounds = array<i64: 1, 32>}, {pipeline_mode = #tpu.pipeline_mode<synchronous>, transform_indices = @transform_7, window_bounds = array<i64: 32, 32>}, {pipeline_mode = #tpu.pipeline_mode<synchronous>, transform_indices = @transform_8, window_bounds = array<i64: 1, 32>}, {pipeline_mode = #tpu.pipeline_mode<synchronous>, transform_indices = @transform_9, window_bounds = array<i64: 1, 32>}, {pipeline_mode = #tpu.pipeline_mode<synchronous>, transform_indices = @transform_10, window_bounds = array<i64: 1, 32>}, {pipeline_mode = #tpu.pipeline_mode<synchronous>, transform_indices = @transform_11, window_bounds = array<i64: 32, 256>}, {pipeline_mode = #tpu.pipeline_mode<synchronous>, transform_indices = @transform_12, window_bounds = array<i64: 1, 256>}, {pipeline_mode = #tpu.pipeline_mode<synchronous>, transform_indices = @transform_13, window_bounds = array<i64: 256, 32>}, {pipeline_mode = #tpu.pipeline_mode<synchronous>, transform_indices = @transform_14, window_bounds = array<i64: 1, 32>}, {pipeline_mode = #tpu.pipeline_mode<synchronous>, transform_indices = @transform_15, window_bounds = array<i64: 1, 32>}, {pipeline_mode = #tpu.pipeline_mode<synchronous>, transform_indices = @transform_16, window_bounds = array<i64: 1, 32>}, {transform_indices = @transform_17, window_bounds = array<i64: 2, 8, 32>}]} {
    %c0 = arith.constant 0 : index
    %c0_0 = arith.constant 0 : index
    %c0_1 = arith.constant 0 : index
    %0 = vector.load %arg1[%c0, %c0_0, %c0_1] : memref<2x8x32xf32, #tpu.memory_space<vmem>>, vector<2x8x32xf32>
    %c0_2 = arith.constant 0 : index
    %c0_3 = arith.constant 0 : index
    %c0_4 = arith.constant 0 : index
    %1 = vector.load %arg2[%c0_2, %c0_3, %c0_4] : memref<2x8x32xf32, #tpu.memory_space<vmem>>, vector<2x8x32xf32>
    %2 = arith.addf %0, %1 : vector<2x8x32xf32>
    %3 = vector.shape_cast %0 : vector<2x8x32xf32> to vector<16x32xf32>
    %4 = vector.shape_cast %2 : vector<2x8x32xf32> to vector<16x32xf32>
    %5 = arith.truncf %4 : vector<16x32xf32> to vector<16x32xbf16>
    %c0_5 = arith.constant 0 : index
    %c0_6 = arith.constant 0 : index
    %6 = vector.load %arg4[%c0_5, %c0_6] : memref<32x64xbf16, #tpu.memory_space<vmem>>, vector<32x64xbf16>
    %cst = arith.constant dense<0.000000e+00> : vector<16x64xf32>
    %7 = tpu.matmul %5, %6, %cst {dimension_numbers = #tpu.dot_dimension_numbers<[1], [0], [0], [1], [0, 0, 1, 1], [], []>} : vector<16x32xbf16>, vector<32x64xbf16>, vector<16x64xf32> -> vector<16x64xf32>
    %c0_7 = arith.constant 0 : index
    %c0_8 = arith.constant 0 : index
    %8 = vector.load %arg5[%c0_7, %c0_8] : memref<1x64xf32, #tpu.memory_space<vmem>>, vector<1x64xf32>
    %9 = vector.broadcast %8 : vector<1x64xf32> to vector<16x64xf32>
    %10 = arith.addf %7, %9 : vector<16x64xf32>
    %11 = arith.truncf %3 : vector<16x32xf32> to vector<16x32xbf16>
    %c0_9 = arith.constant 0 : index
    %c0_10 = arith.constant 0 : index
    %12 = vector.load %arg6[%c0_9, %c0_10] : memref<32x32xbf16, #tpu.memory_space<vmem>>, vector<32x32xbf16>
    %cst_11 = arith.constant dense<0.000000e+00> : vector<16x32xf32>
    %13 = tpu.matmul %11, %12, %cst_11 {dimension_numbers = #tpu.dot_dimension_numbers<[1], [0], [0], [1], [0, 0, 1, 1], [], []>} : vector<16x32xbf16>, vector<32x32xbf16>, vector<16x32xf32> -> vector<16x32xf32>
    %c0_12 = arith.constant 0 : index
    %c0_13 = arith.constant 0 : index
    %14 = vector.load %arg7[%c0_12, %c0_13] : memref<1x32xf32, #tpu.memory_space<vmem>>, vector<1x32xf32>
    %15 = vector.broadcast %14 : vector<1x32xf32> to vector<16x32xf32>
    %16 = arith.addf %13, %15 : vector<16x32xf32>
    %17 = arith.truncf %10 : vector<16x64xf32> to vector<16x64xbf16>
    %18 = vector.shape_cast %17 : vector<16x64xbf16> to vector<2x8x64xbf16>
    %19 = arith.truncf %16 : vector<16x32xf32> to vector<16x32xbf16>
    %20 = vector.shape_cast %19 : vector<16x32xbf16> to vector<2x8x32xbf16>
    %c0_14 = arith.constant 0 : index
    %c0_15 = arith.constant 0 : index
    %c0_16 = arith.constant 0 : index
    %21 = vector.load %arg3[%c0_14, %c0_15, %c0_16] : memref<2x1x8xf32, #tpu.memory_space<vmem>>, vector<2x1x8xf32>
    %22 = vector.shape_cast %21 : vector<2x1x8xf32> to vector<2x1x8xf32>
    %23 = vector.broadcast %22 : vector<2x1x8xf32> to vector<2x8x8xf32>
    %24 = vector.extract_strided_slice %18 {offsets = [0, 0, 0], sizes = [2, 8, 4], strides = [1, 1, 1]} : vector<2x8x64xbf16> to vector<2x8x4xbf16>
    %25 = vector.extract_strided_slice %18 {offsets = [0, 0, 32], sizes = [2, 8, 4], strides = [1, 1, 1]} : vector<2x8x64xbf16> to vector<2x8x4xbf16>
    %26 = vector.extract_strided_slice %20 {offsets = [0, 0, 0], sizes = [2, 8, 4], strides = [1, 1, 1]} : vector<2x8x32xbf16> to vector<2x8x4xbf16>
    "tpu.trace_start"() <{level = 10 : i32, message = "bqd,bkd->bqk"}> : () -> ()
    %cst_17 = arith.constant dense<0.000000e+00> : vector<2x8x8xf32>
    %27 = tpu.matmul %24, %25, %cst_17 {dimension_numbers = #tpu.dot_dimension_numbers<[2], [2], [1], [1], [0, 0, 0, 1, 1, 1], [0], [0]>} : vector<2x8x4xbf16>, vector<2x8x4xbf16>, vector<2x8x8xf32> -> vector<2x8x8xf32>
    "tpu.trace_stop"() : () -> ()
    %28 = arith.addf %27, %23 : vector<2x8x8xf32>
    %cst_18 = arith.constant dense<0xFF800000> : vector<2x8xf32>
    %29 = vector.multi_reduction <maximumf>, %28, %cst_18 [2] : vector<2x8x8xf32> to vector<2x8xf32>
    %30 = vector.shape_cast %29 : vector<2x8xf32> to vector<2x8x1xf32>
    %31 = vector.broadcast %30 : vector<2x8x1xf32> to vector<2x8x8xf32>
    %32 = arith.subf %28, %31 : vector<2x8x8xf32>
    %33 = math.exp %32 : vector<2x8x8xf32>
    %cst_19 = arith.constant dense<0.000000e+00> : vector<2x8xf32>
    %34 = vector.multi_reduction <add>, %33, %cst_19 [2] : vector<2x8x8xf32> to vector<2x8xf32>
    %35 = vector.shape_cast %34 : vector<2x8xf32> to vector<2x8x1xf32>
    %36 = tpu.reciprocal %35 {approx = true} : vector<2x8x1xf32> -> vector<2x8x1xf32>
    %37 = vector.broadcast %36 : vector<2x8x1xf32> to vector<2x8x8xf32>
    %38 = arith.mulf %33, %37 : vector<2x8x8xf32>
    %39 = arith.truncf %38 : vector<2x8x8xf32> to vector<2x8x8xbf16>
    "tpu.trace_start"() <{level = 10 : i32, message = "bqk,bkd->bqd"}> : () -> ()
    %cst_20 = arith.constant dense<0.000000e+00> : vector<2x8x4xf32>
    %40 = tpu.matmul %39, %26, %cst_20 {dimension_numbers = #tpu.dot_dimension_numbers<[2], [1], [1], [2], [0, 0, 0, 1, 1, 2], [0], [0]>} : vector<2x8x8xbf16>, vector<2x8x4xbf16>, vector<2x8x4xf32> -> vector<2x8x4xf32>
    "tpu.trace_stop"() : () -> ()
    %41 = vector.extract_strided_slice %18 {offsets = [0, 0, 4], sizes = [2, 8, 4], strides = [1, 1, 1]} : vector<2x8x64xbf16> to vector<2x8x4xbf16>
    %42 = vector.extract_strided_slice %18 {offsets = [0, 0, 36], sizes = [2, 8, 4], strides = [1, 1, 1]} : vector<2x8x64xbf16> to vector<2x8x4xbf16>
    %43 = vector.extract_strided_slice %20 {offsets = [0, 0, 4], sizes = [2, 8, 4], strides = [1, 1, 1]} : vector<2x8x32xbf16> to vector<2x8x4xbf16>
    "tpu.trace_start"() <{level = 10 : i32, message = "bqd,bkd->bqk"}> : () -> ()
    %cst_21 = arith.constant dense<0.000000e+00> : vector<2x8x8xf32>
    %44 = tpu.matmul %41, %42, %cst_21 {dimension_numbers = #tpu.dot_dimension_numbers<[2], [2], [1], [1], [0, 0, 0, 1, 1, 1], [0], [0]>} : vector<2x8x4xbf16>, vector<2x8x4xbf16>, vector<2x8x8xf32> -> vector<2x8x8xf32>
    "tpu.trace_stop"() : () -> ()
    %45 = arith.addf %44, %23 : vector<2x8x8xf32>
    %cst_22 = arith.constant dense<0xFF800000> : vector<2x8xf32>
    %46 = vector.multi_reduction <maximumf>, %45, %cst_22 [2] : vector<2x8x8xf32> to vector<2x8xf32>
    %47 = vector.shape_cast %46 : vector<2x8xf32> to vector<2x8x1xf32>
    %48 = vector.broadcast %47 : vector<2x8x1xf32> to vector<2x8x8xf32>
    %49 = arith.subf %45, %48 : vector<2x8x8xf32>
    %50 = math.exp %49 : vector<2x8x8xf32>
    %cst_23 = arith.constant dense<0.000000e+00> : vector<2x8xf32>
    %51 = vector.multi_reduction <add>, %50, %cst_23 [2] : vector<2x8x8xf32> to vector<2x8xf32>
    %52 = vector.shape_cast %51 : vector<2x8xf32> to vector<2x8x1xf32>
    %53 = tpu.reciprocal %52 {approx = true} : vector<2x8x1xf32> -> vector<2x8x1xf32>
    %54 = vector.broadcast %53 : vector<2x8x1xf32> to vector<2x8x8xf32>
    %55 = arith.mulf %50, %54 : vector<2x8x8xf32>
    %56 = arith.truncf %55 : vector<2x8x8xf32> to vector<2x8x8xbf16>
    "tpu.trace_start"() <{level = 10 : i32, message = "bqk,bkd->bqd"}> : () -> ()
    %cst_24 = arith.constant dense<0.000000e+00> : vector<2x8x4xf32>
    %57 = tpu.matmul %56, %43, %cst_24 {dimension_numbers = #tpu.dot_dimension_numbers<[2], [1], [1], [2], [0, 0, 0, 1, 1, 2], [0], [0]>} : vector<2x8x8xbf16>, vector<2x8x4xbf16>, vector<2x8x4xf32> -> vector<2x8x4xf32>
    "tpu.trace_stop"() : () -> ()
    %58 = vector.extract_strided_slice %18 {offsets = [0, 0, 8], sizes = [2, 8, 4], strides = [1, 1, 1]} : vector<2x8x64xbf16> to vector<2x8x4xbf16>
    %59 = vector.extract_strided_slice %18 {offsets = [0, 0, 40], sizes = [2, 8, 4], strides = [1, 1, 1]} : vector<2x8x64xbf16> to vector<2x8x4xbf16>
    %60 = vector.extract_strided_slice %20 {offsets = [0, 0, 8], sizes = [2, 8, 4], strides = [1, 1, 1]} : vector<2x8x32xbf16> to vector<2x8x4xbf16>
    "tpu.trace_start"() <{level = 10 : i32, message = "bqd,bkd->bqk"}> : () -> ()
    %cst_25 = arith.constant dense<0.000000e+00> : vector<2x8x8xf32>
    %61 = tpu.matmul %58, %59, %cst_25 {dimension_numbers = #tpu.dot_dimension_numbers<[2], [2], [1], [1], [0, 0, 0, 1, 1, 1], [0], [0]>} : vector<2x8x4xbf16>, vector<2x8x4xbf16>, vector<2x8x8xf32> -> vector<2x8x8xf32>
    "tpu.trace_stop"() : () -> ()
    %62 = arith.addf %61, %23 : vector<2x8x8xf32>
    %cst_26 = arith.constant dense<0xFF800000> : vector<2x8xf32>
    %63 = vector.multi_reduction <maximumf>, %62, %cst_26 [2] : vector<2x8x8xf32> to vector<2x8xf32>
    %64 = vector.shape_cast %63 : vector<2x8xf32> to vector<2x8x1xf32>
    %65 = vector.broadcast %64 : vector<2x8x1xf32> to vector<2x8x8xf32>
    %66 = arith.subf %62, %65 : vector<2x8x8xf32>
    %67 = math.exp %66 : vector<2x8x8xf32>
    %cst_27 = arith.constant dense<0.000000e+00> : vector<2x8xf32>
    %68 = vector.multi_reduction <add>, %67, %cst_27 [2] : vector<2x8x8xf32> to vector<2x8xf32>
    %69 = vector.shape_cast %68 : vector<2x8xf32> to vector<2x8x1xf32>
    %70 = tpu.reciprocal %69 {approx = true} : vector<2x8x1xf32> -> vector<2x8x1xf32>
    %71 = vector.broadcast %70 : vector<2x8x1xf32> to vector<2x8x8xf32>
    %72 = arith.mulf %67, %71 : vector<2x8x8xf32>
    %73 = arith.truncf %72 : vector<2x8x8xf32> to vector<2x8x8xbf16>
    "tpu.trace_start"() <{level = 10 : i32, message = "bqk,bkd->bqd"}> : () -> ()
    %cst_28 = arith.constant dense<0.000000e+00> : vector<2x8x4xf32>
    %74 = tpu.matmul %73, %60, %cst_28 {dimension_numbers = #tpu.dot_dimension_numbers<[2], [1], [1], [2], [0, 0, 0, 1, 1, 2], [0], [0]>} : vector<2x8x8xbf16>, vector<2x8x4xbf16>, vector<2x8x4xf32> -> vector<2x8x4xf32>
    "tpu.trace_stop"() : () -> ()
    %75 = vector.extract_strided_slice %18 {offsets = [0, 0, 12], sizes = [2, 8, 4], strides = [1, 1, 1]} : vector<2x8x64xbf16> to vector<2x8x4xbf16>
    %76 = vector.extract_strided_slice %18 {offsets = [0, 0, 44], sizes = [2, 8, 4], strides = [1, 1, 1]} : vector<2x8x64xbf16> to vector<2x8x4xbf16>
    %77 = vector.extract_strided_slice %20 {offsets = [0, 0, 12], sizes = [2, 8, 4], strides = [1, 1, 1]} : vector<2x8x32xbf16> to vector<2x8x4xbf16>
    "tpu.trace_start"() <{level = 10 : i32, message = "bqd,bkd->bqk"}> : () -> ()
    %cst_29 = arith.constant dense<0.000000e+00> : vector<2x8x8xf32>
    %78 = tpu.matmul %75, %76, %cst_29 {dimension_numbers = #tpu.dot_dimension_numbers<[2], [2], [1], [1], [0, 0, 0, 1, 1, 1], [0], [0]>} : vector<2x8x4xbf16>, vector<2x8x4xbf16>, vector<2x8x8xf32> -> vector<2x8x8xf32>
    "tpu.trace_stop"() : () -> ()
    %79 = arith.addf %78, %23 : vector<2x8x8xf32>
    %cst_30 = arith.constant dense<0xFF800000> : vector<2x8xf32>
    %80 = vector.multi_reduction <maximumf>, %79, %cst_30 [2] : vector<2x8x8xf32> to vector<2x8xf32>
    %81 = vector.shape_cast %80 : vector<2x8xf32> to vector<2x8x1xf32>
    %82 = vector.broadcast %81 : vector<2x8x1xf32> to vector<2x8x8xf32>
    %83 = arith.subf %79, %82 : vector<2x8x8xf32>
    %84 = math.exp %83 : vector<2x8x8xf32>
    %cst_31 = arith.constant dense<0.000000e+00> : vector<2x8xf32>
    %85 = vector.multi_reduction <add>, %84, %cst_31 [2] : vector<2x8x8xf32> to vector<2x8xf32>
    %86 = vector.shape_cast %85 : vector<2x8xf32> to vector<2x8x1xf32>
    %87 = tpu.reciprocal %86 {approx = true} : vector<2x8x1xf32> -> vector<2x8x1xf32>
    %88 = vector.broadcast %87 : vector<2x8x1xf32> to vector<2x8x8xf32>
    %89 = arith.mulf %84, %88 : vector<2x8x8xf32>
    %90 = arith.truncf %89 : vector<2x8x8xf32> to vector<2x8x8xbf16>
    "tpu.trace_start"() <{level = 10 : i32, message = "bqk,bkd->bqd"}> : () -> ()
    %cst_32 = arith.constant dense<0.000000e+00> : vector<2x8x4xf32>
    %91 = tpu.matmul %90, %77, %cst_32 {dimension_numbers = #tpu.dot_dimension_numbers<[2], [1], [1], [2], [0, 0, 0, 1, 1, 2], [0], [0]>} : vector<2x8x8xbf16>, vector<2x8x4xbf16>, vector<2x8x4xf32> -> vector<2x8x4xf32>
    "tpu.trace_stop"() : () -> ()
    %92 = vector.extract_strided_slice %18 {offsets = [0, 0, 16], sizes = [2, 8, 4], strides = [1, 1, 1]} : vector<2x8x64xbf16> to vector<2x8x4xbf16>
    %93 = vector.extract_strided_slice %18 {offsets = [0, 0, 48], sizes = [2, 8, 4], strides = [1, 1, 1]} : vector<2x8x64xbf16> to vector<2x8x4xbf16>
    %94 = vector.extract_strided_slice %20 {offsets = [0, 0, 16], sizes = [2, 8, 4], strides = [1, 1, 1]} : vector<2x8x32xbf16> to vector<2x8x4xbf16>
    "tpu.trace_start"() <{level = 10 : i32, message = "bqd,bkd->bqk"}> : () -> ()
    %cst_33 = arith.constant dense<0.000000e+00> : vector<2x8x8xf32>
    %95 = tpu.matmul %92, %93, %cst_33 {dimension_numbers = #tpu.dot_dimension_numbers<[2], [2], [1], [1], [0, 0, 0, 1, 1, 1], [0], [0]>} : vector<2x8x4xbf16>, vector<2x8x4xbf16>, vector<2x8x8xf32> -> vector<2x8x8xf32>
    "tpu.trace_stop"() : () -> ()
    %96 = arith.addf %95, %23 : vector<2x8x8xf32>
    %cst_34 = arith.constant dense<0xFF800000> : vector<2x8xf32>
    %97 = vector.multi_reduction <maximumf>, %96, %cst_34 [2] : vector<2x8x8xf32> to vector<2x8xf32>
    %98 = vector.shape_cast %97 : vector<2x8xf32> to vector<2x8x1xf32>
    %99 = vector.broadcast %98 : vector<2x8x1xf32> to vector<2x8x8xf32>
    %100 = arith.subf %96, %99 : vector<2x8x8xf32>
    %101 = math.exp %100 : vector<2x8x8xf32>
    %cst_35 = arith.constant dense<0.000000e+00> : vector<2x8xf32>
    %102 = vector.multi_reduction <add>, %101, %cst_35 [2] : vector<2x8x8xf32> to vector<2x8xf32>
    %103 = vector.shape_cast %102 : vector<2x8xf32> to vector<2x8x1xf32>
    %104 = tpu.reciprocal %103 {approx = true} : vector<2x8x1xf32> -> vector<2x8x1xf32>
    %105 = vector.broadcast %104 : vector<2x8x1xf32> to vector<2x8x8xf32>
    %106 = arith.mulf %101, %105 : vector<2x8x8xf32>
    %107 = arith.truncf %106 : vector<2x8x8xf32> to vector<2x8x8xbf16>
    "tpu.trace_start"() <{level = 10 : i32, message = "bqk,bkd->bqd"}> : () -> ()
    %cst_36 = arith.constant dense<0.000000e+00> : vector<2x8x4xf32>
    %108 = tpu.matmul %107, %94, %cst_36 {dimension_numbers = #tpu.dot_dimension_numbers<[2], [1], [1], [2], [0, 0, 0, 1, 1, 2], [0], [0]>} : vector<2x8x8xbf16>, vector<2x8x4xbf16>, vector<2x8x4xf32> -> vector<2x8x4xf32>
    "tpu.trace_stop"() : () -> ()
    %109 = vector.extract_strided_slice %18 {offsets = [0, 0, 20], sizes = [2, 8, 4], strides = [1, 1, 1]} : vector<2x8x64xbf16> to vector<2x8x4xbf16>
    %110 = vector.extract_strided_slice %18 {offsets = [0, 0, 52], sizes = [2, 8, 4], strides = [1, 1, 1]} : vector<2x8x64xbf16> to vector<2x8x4xbf16>
    %111 = vector.extract_strided_slice %20 {offsets = [0, 0, 20], sizes = [2, 8, 4], strides = [1, 1, 1]} : vector<2x8x32xbf16> to vector<2x8x4xbf16>
    "tpu.trace_start"() <{level = 10 : i32, message = "bqd,bkd->bqk"}> : () -> ()
    %cst_37 = arith.constant dense<0.000000e+00> : vector<2x8x8xf32>
    %112 = tpu.matmul %109, %110, %cst_37 {dimension_numbers = #tpu.dot_dimension_numbers<[2], [2], [1], [1], [0, 0, 0, 1, 1, 1], [0], [0]>} : vector<2x8x4xbf16>, vector<2x8x4xbf16>, vector<2x8x8xf32> -> vector<2x8x8xf32>
    "tpu.trace_stop"() : () -> ()
    %113 = arith.addf %112, %23 : vector<2x8x8xf32>
    %cst_38 = arith.constant dense<0xFF800000> : vector<2x8xf32>
    %114 = vector.multi_reduction <maximumf>, %113, %cst_38 [2] : vector<2x8x8xf32> to vector<2x8xf32>
    %115 = vector.shape_cast %114 : vector<2x8xf32> to vector<2x8x1xf32>
    %116 = vector.broadcast %115 : vector<2x8x1xf32> to vector<2x8x8xf32>
    %117 = arith.subf %113, %116 : vector<2x8x8xf32>
    %118 = math.exp %117 : vector<2x8x8xf32>
    %cst_39 = arith.constant dense<0.000000e+00> : vector<2x8xf32>
    %119 = vector.multi_reduction <add>, %118, %cst_39 [2] : vector<2x8x8xf32> to vector<2x8xf32>
    %120 = vector.shape_cast %119 : vector<2x8xf32> to vector<2x8x1xf32>
    %121 = tpu.reciprocal %120 {approx = true} : vector<2x8x1xf32> -> vector<2x8x1xf32>
    %122 = vector.broadcast %121 : vector<2x8x1xf32> to vector<2x8x8xf32>
    %123 = arith.mulf %118, %122 : vector<2x8x8xf32>
    %124 = arith.truncf %123 : vector<2x8x8xf32> to vector<2x8x8xbf16>
    "tpu.trace_start"() <{level = 10 : i32, message = "bqk,bkd->bqd"}> : () -> ()
    %cst_40 = arith.constant dense<0.000000e+00> : vector<2x8x4xf32>
    %125 = tpu.matmul %124, %111, %cst_40 {dimension_numbers = #tpu.dot_dimension_numbers<[2], [1], [1], [2], [0, 0, 0, 1, 1, 2], [0], [0]>} : vector<2x8x8xbf16>, vector<2x8x4xbf16>, vector<2x8x4xf32> -> vector<2x8x4xf32>
    "tpu.trace_stop"() : () -> ()
    %126 = vector.extract_strided_slice %18 {offsets = [0, 0, 24], sizes = [2, 8, 4], strides = [1, 1, 1]} : vector<2x8x64xbf16> to vector<2x8x4xbf16>
    %127 = vector.extract_strided_slice %18 {offsets = [0, 0, 56], sizes = [2, 8, 4], strides = [1, 1, 1]} : vector<2x8x64xbf16> to vector<2x8x4xbf16>
    %128 = vector.extract_strided_slice %20 {offsets = [0, 0, 24], sizes = [2, 8, 4], strides = [1, 1, 1]} : vector<2x8x32xbf16> to vector<2x8x4xbf16>
    "tpu.trace_start"() <{level = 10 : i32, message = "bqd,bkd->bqk"}> : () -> ()
    %cst_41 = arith.constant dense<0.000000e+00> : vector<2x8x8xf32>
    %129 = tpu.matmul %126, %127, %cst_41 {dimension_numbers = #tpu.dot_dimension_numbers<[2], [2], [1], [1], [0, 0, 0, 1, 1, 1], [0], [0]>} : vector<2x8x4xbf16>, vector<2x8x4xbf16>, vector<2x8x8xf32> -> vector<2x8x8xf32>
    "tpu.trace_stop"() : () -> ()
    %130 = arith.addf %129, %23 : vector<2x8x8xf32>
    %cst_42 = arith.constant dense<0xFF800000> : vector<2x8xf32>
    %131 = vector.multi_reduction <maximumf>, %130, %cst_42 [2] : vector<2x8x8xf32> to vector<2x8xf32>
    %132 = vector.shape_cast %131 : vector<2x8xf32> to vector<2x8x1xf32>
    %133 = vector.broadcast %132 : vector<2x8x1xf32> to vector<2x8x8xf32>
    %134 = arith.subf %130, %133 : vector<2x8x8xf32>
    %135 = math.exp %134 : vector<2x8x8xf32>
    %cst_43 = arith.constant dense<0.000000e+00> : vector<2x8xf32>
    %136 = vector.multi_reduction <add>, %135, %cst_43 [2] : vector<2x8x8xf32> to vector<2x8xf32>
    %137 = vector.shape_cast %136 : vector<2x8xf32> to vector<2x8x1xf32>
    %138 = tpu.reciprocal %137 {approx = true} : vector<2x8x1xf32> -> vector<2x8x1xf32>
    %139 = vector.broadcast %138 : vector<2x8x1xf32> to vector<2x8x8xf32>
    %140 = arith.mulf %135, %139 : vector<2x8x8xf32>
    %141 = arith.truncf %140 : vector<2x8x8xf32> to vector<2x8x8xbf16>
    "tpu.trace_start"() <{level = 10 : i32, message = "bqk,bkd->bqd"}> : () -> ()
    %cst_44 = arith.constant dense<0.000000e+00> : vector<2x8x4xf32>
    %142 = tpu.matmul %141, %128, %cst_44 {dimension_numbers = #tpu.dot_dimension_numbers<[2], [1], [1], [2], [0, 0, 0, 1, 1, 2], [0], [0]>} : vector<2x8x8xbf16>, vector<2x8x4xbf16>, vector<2x8x4xf32> -> vector<2x8x4xf32>
    "tpu.trace_stop"() : () -> ()
    %143 = vector.extract_strided_slice %18 {offsets = [0, 0, 28], sizes = [2, 8, 4], strides = [1, 1, 1]} : vector<2x8x64xbf16> to vector<2x8x4xbf16>
    %144 = vector.extract_strided_slice %18 {offsets = [0, 0, 60], sizes = [2, 8, 4], strides = [1, 1, 1]} : vector<2x8x64xbf16> to vector<2x8x4xbf16>
    %145 = vector.extract_strided_slice %20 {offsets = [0, 0, 28], sizes = [2, 8, 4], strides = [1, 1, 1]} : vector<2x8x32xbf16> to vector<2x8x4xbf16>
    "tpu.trace_start"() <{level = 10 : i32, message = "bqd,bkd->bqk"}> : () -> ()
    %cst_45 = arith.constant dense<0.000000e+00> : vector<2x8x8xf32>
    %146 = tpu.matmul %143, %144, %cst_45 {dimension_numbers = #tpu.dot_dimension_numbers<[2], [2], [1], [1], [0, 0, 0, 1, 1, 1], [0], [0]>} : vector<2x8x4xbf16>, vector<2x8x4xbf16>, vector<2x8x8xf32> -> vector<2x8x8xf32>
    "tpu.trace_stop"() : () -> ()
    %147 = arith.addf %146, %23 : vector<2x8x8xf32>
    %cst_46 = arith.constant dense<0xFF800000> : vector<2x8xf32>
    %148 = vector.multi_reduction <maximumf>, %147, %cst_46 [2] : vector<2x8x8xf32> to vector<2x8xf32>
    %149 = vector.shape_cast %148 : vector<2x8xf32> to vector<2x8x1xf32>
    %150 = vector.broadcast %149 : vector<2x8x1xf32> to vector<2x8x8xf32>
    %151 = arith.subf %147, %150 : vector<2x8x8xf32>
    %152 = math.exp %151 : vector<2x8x8xf32>
    %cst_47 = arith.constant dense<0.000000e+00> : vector<2x8xf32>
    %153 = vector.multi_reduction <add>, %152, %cst_47 [2] : vector<2x8x8xf32> to vector<2x8xf32>
    %154 = vector.shape_cast %153 : vector<2x8xf32> to vector<2x8x1xf32>
    %155 = tpu.reciprocal %154 {approx = true} : vector<2x8x1xf32> -> vector<2x8x1xf32>
    %156 = vector.broadcast %155 : vector<2x8x1xf32> to vector<2x8x8xf32>
    %157 = arith.mulf %152, %156 : vector<2x8x8xf32>
    %158 = arith.truncf %157 : vector<2x8x8xf32> to vector<2x8x8xbf16>
    "tpu.trace_start"() <{level = 10 : i32, message = "bqk,bkd->bqd"}> : () -> ()
    %cst_48 = arith.constant dense<0.000000e+00> : vector<2x8x4xf32>
    %159 = tpu.matmul %158, %145, %cst_48 {dimension_numbers = #tpu.dot_dimension_numbers<[2], [1], [1], [2], [0, 0, 0, 1, 1, 2], [0], [0]>} : vector<2x8x8xbf16>, vector<2x8x4xbf16>, vector<2x8x4xf32> -> vector<2x8x4xf32>
    "tpu.trace_stop"() : () -> ()
    %160 = tpu.concatenate %40, %57, %74, %91, %108, %125, %142, %159 in 2 : vector<2x8x4xf32>, vector<2x8x4xf32>, vector<2x8x4xf32>, vector<2x8x4xf32>, vector<2x8x4xf32>, vector<2x8x4xf32>, vector<2x8x4xf32>, vector<2x8x4xf32> -> vector<2x8x32xf32>
    %161 = vector.shape_cast %160 : vector<2x8x32xf32> to vector<16x32xf32>
    %162 = arith.truncf %161 : vector<16x32xf32> to vector<16x32xbf16>
    %c0_49 = arith.constant 0 : index
    %c0_50 = arith.constant 0 : index
    %163 = vector.load %arg8[%c0_49, %c0_50] : memref<32x32xbf16, #tpu.memory_space<vmem>>, vector<32x32xbf16>
    %cst_51 = arith.constant dense<0.000000e+00> : vector<16x32xf32>
    %164 = tpu.matmul %162, %163, %cst_51 {dimension_numbers = #tpu.dot_dimension_numbers<[1], [0], [0], [1], [0, 0, 1, 1], [], []>} : vector<16x32xbf16>, vector<32x32xbf16>, vector<16x32xf32> -> vector<16x32xf32>
    %c0_52 = arith.constant 0 : index
    %c0_53 = arith.constant 0 : index
    %165 = vector.load %arg9[%c0_52, %c0_53] : memref<1x32xf32, #tpu.memory_space<vmem>>, vector<1x32xf32>
    %166 = vector.broadcast %165 : vector<1x32xf32> to vector<16x32xf32>
    %167 = arith.addf %164, %166 : vector<16x32xf32>
    %168 = arith.addf %3, %167 : vector<16x32xf32>
    %cst_54 = arith.constant dense<0.000000e+00> : vector<16xf32>
    %169 = vector.multi_reduction <add>, %168, %cst_54 [1] : vector<16x32xf32> to vector<16xf32>
    %170 = vector.shape_cast %169 : vector<16xf32> to vector<16x1xf32>
    %cst_55 = arith.constant 3.200000e+01 : f32
    %171 = vector.broadcast %cst_55 : f32 to vector<16x1xf32>
    %172 = arith.divf %170, %171 : vector<16x1xf32>
    %173 = vector.broadcast %172 : vector<16x1xf32> to vector<16x32xf32>
    %174 = arith.subf %168, %173 : vector<16x32xf32>
    %175 = arith.mulf %174, %174 : vector<16x32xf32>
    %cst_56 = arith.constant dense<0.000000e+00> : vector<16xf32>
    %176 = vector.multi_reduction <add>, %175, %cst_56 [1] : vector<16x32xf32> to vector<16xf32>
    %177 = vector.shape_cast %176 : vector<16xf32> to vector<16x1xf32>
    %cst_57 = arith.constant 3.200000e+01 : f32
    %178 = vector.broadcast %cst_57 : f32 to vector<16x1xf32>
    %179 = arith.divf %177, %178 : vector<16x1xf32>
    %cst_58 = arith.constant 9.99999974E-6 : f32
    %180 = vector.broadcast %cst_58 : f32 to vector<16x1xf32>
    %181 = arith.addf %179, %180 : vector<16x1xf32>
    %182 = math.rsqrt %181 : vector<16x1xf32>
    %183 = vector.broadcast %182 : vector<16x1xf32> to vector<16x32xf32>
    %184 = arith.mulf %174, %183 : vector<16x32xf32>
    %c0_59 = arith.constant 0 : index
    %c0_60 = arith.constant 0 : index
    %185 = vector.load %arg10[%c0_59, %c0_60] : memref<1x32xf32, #tpu.memory_space<vmem>>, vector<1x32xf32>
    %186 = vector.broadcast %185 : vector<1x32xf32> to vector<16x32xf32>
    %187 = arith.mulf %184, %186 : vector<16x32xf32>
    %c0_61 = arith.constant 0 : index
    %c0_62 = arith.constant 0 : index
    %188 = vector.load %arg11[%c0_61, %c0_62] : memref<1x32xf32, #tpu.memory_space<vmem>>, vector<1x32xf32>
    %189 = vector.broadcast %188 : vector<1x32xf32> to vector<16x32xf32>
    %190 = arith.addf %187, %189 : vector<16x32xf32>
    %191 = arith.truncf %190 : vector<16x32xf32> to vector<16x32xbf16>
    %c0_63 = arith.constant 0 : index
    %c0_64 = arith.constant 0 : index
    %192 = vector.load %arg12[%c0_63, %c0_64] : memref<32x256xbf16, #tpu.memory_space<vmem>>, vector<32x256xbf16>
    %cst_65 = arith.constant dense<0.000000e+00> : vector<16x256xf32>
    %193 = tpu.matmul %191, %192, %cst_65 {dimension_numbers = #tpu.dot_dimension_numbers<[1], [0], [0], [1], [0, 0, 1, 1], [], []>} : vector<16x32xbf16>, vector<32x256xbf16>, vector<16x256xf32> -> vector<16x256xf32>
    %c0_66 = arith.constant 0 : index
    %c0_67 = arith.constant 0 : index
    %194 = vector.load %arg13[%c0_66, %c0_67] : memref<1x256xf32, #tpu.memory_space<vmem>>, vector<1x256xf32>
    %195 = vector.broadcast %194 : vector<1x256xf32> to vector<16x256xf32>
    %196 = arith.addf %193, %195 : vector<16x256xf32>
    %cst_68 = arith.constant 0.000000e+00 : f32
    %197 = vector.broadcast %cst_68 : f32 to vector<16x256xf32>
    %198 = arith.maximumf %196, %197 : vector<16x256xf32>
    %199 = arith.truncf %198 : vector<16x256xf32> to vector<16x256xbf16>
    %c0_69 = arith.constant 0 : index
    %c0_70 = arith.constant 0 : index
    %200 = vector.load %arg14[%c0_69, %c0_70] : memref<256x32xbf16, #tpu.memory_space<vmem>>, vector<256x32xbf16>
    %cst_71 = arith.constant dense<0.000000e+00> : vector<16x32xf32>
    %201 = tpu.matmul %199, %200, %cst_71 {dimension_numbers = #tpu.dot_dimension_numbers<[1], [0], [0], [1], [0, 0, 1, 1], [], []>} : vector<16x256xbf16>, vector<256x32xbf16>, vector<16x32xf32> -> vector<16x32xf32>
    %c0_72 = arith.constant 0 : index
    %c0_73 = arith.constant 0 : index
    %202 = vector.load %arg15[%c0_72, %c0_73] : memref<1x32xf32, #tpu.memory_space<vmem>>, vector<1x32xf32>
    %203 = vector.broadcast %202 : vector<1x32xf32> to vector<16x32xf32>
    %204 = arith.addf %201, %203 : vector<16x32xf32>
    %205 = arith.addf %190, %204 : vector<16x32xf32>
    %cst_74 = arith.constant dense<0.000000e+00> : vector<16xf32>
    %206 = vector.multi_reduction <add>, %205, %cst_74 [1] : vector<16x32xf32> to vector<16xf32>
    %207 = vector.shape_cast %206 : vector<16xf32> to vector<16x1xf32>
    %cst_75 = arith.constant 3.200000e+01 : f32
    %208 = vector.broadcast %cst_75 : f32 to vector<16x1xf32>
    %209 = arith.divf %207, %208 : vector<16x1xf32>
    %210 = vector.broadcast %209 : vector<16x1xf32> to vector<16x32xf32>
    %211 = arith.subf %205, %210 : vector<16x32xf32>
    %212 = arith.mulf %211, %211 : vector<16x32xf32>
    %cst_76 = arith.constant dense<0.000000e+00> : vector<16xf32>
    %213 = vector.multi_reduction <add>, %212, %cst_76 [1] : vector<16x32xf32> to vector<16xf32>
    %214 = vector.shape_cast %213 : vector<16xf32> to vector<16x1xf32>
    %cst_77 = arith.constant 3.200000e+01 : f32
    %215 = vector.broadcast %cst_77 : f32 to vector<16x1xf32>
    %216 = arith.divf %214, %215 : vector<16x1xf32>
    %cst_78 = arith.constant 9.99999974E-6 : f32
    %217 = vector.broadcast %cst_78 : f32 to vector<16x1xf32>
    %218 = arith.addf %216, %217 : vector<16x1xf32>
    %219 = math.rsqrt %218 : vector<16x1xf32>
    %220 = vector.broadcast %219 : vector<16x1xf32> to vector<16x32xf32>
    %221 = arith.mulf %211, %220 : vector<16x32xf32>
    %c0_79 = arith.constant 0 : index
    %c0_80 = arith.constant 0 : index
    %222 = vector.load %arg16[%c0_79, %c0_80] : memref<1x32xf32, #tpu.memory_space<vmem>>, vector<1x32xf32>
    %223 = vector.broadcast %222 : vector<1x32xf32> to vector<16x32xf32>
    %224 = arith.mulf %221, %223 : vector<16x32xf32>
    %c0_81 = arith.constant 0 : index
    %c0_82 = arith.constant 0 : index
    %225 = vector.load %arg17[%c0_81, %c0_82] : memref<1x32xf32, #tpu.memory_space<vmem>>, vector<1x32xf32>
    %226 = vector.broadcast %225 : vector<1x32xf32> to vector<16x32xf32>
    %227 = arith.addf %224, %226 : vector<16x32xf32>
    %228 = vector.shape_cast %227 : vector<16x32xf32> to vector<2x8x32xf32>
    %c0_83 = arith.constant 0 : index
    %c0_84 = arith.constant 0 : index
    %c0_85 = arith.constant 0 : index
    %229 = vector.load %arg18[%c0_83, %c0_84, %c0_85] : memref<2x8x32xf32, #tpu.memory_space<vmem>>, vector<2x8x32xf32>
    tpu.vector_store %arg18[%c0_83, %c0_84, %c0_85], %228 {strides = array<i32>} : memref<2x8x32xf32, #tpu.memory_space<vmem>>, vector<2x8x32xf32>,
    return
  }
  func.func @transform_0(%arg0: i32) -> (i32, i32, i32) {
    %c0_i32 = arith.constant 0 : i32
    %c0_i32_0 = arith.constant 0 : i32
    %c0_i32_1 = arith.constant 0 : i32
    return %arg0, %c0_i32, %c0_i32_0 : i32, i32, i32
  }
  func.func @transform_1(%arg0: i32) -> (i32, i32, i32) {
    %c0_i32 = arith.constant 0 : i32
    %c0_i32_0 = arith.constant 0 : i32
    %c0_i32_1 = arith.constant 0 : i32
    return %arg0, %c0_i32, %c0_i32_0 : i32, i32, i32
  }
  func.func @transform_2(%arg0: i32) -> (i32, i32, i32) {
    %c0_i32 = arith.constant 0 : i32
    %c0_i32_0 = arith.constant 0 : i32
    %c0_i32_1 = arith.constant 0 : i32
    return %arg0, %c0_i32, %c0_i32_0 : i32, i32, i32
  }
  func.func @transform_3(%arg0: i32) -> (i32, i32) {
    %c0_i32 = arith.constant 0 : i32
    %c0_i32_0 = arith.constant 0 : i32
    %c0_i32_1 = arith.constant 0 : i32
    return %c0_i32, %c0_i32_0 : i32, i32
  }
  func.func @transform_4(%arg0: i32) -> (i32, i32) {
    %c0_i32 = arith.constant 0 : i32
    %c0_i32_0 = arith.constant 0 : i32
    %c0_i32_1 = arith.constant 0 : i32
    return %c0_i32, %c0_i32_0 : i32, i32
  }
  func.func @transform_5(%arg0: i32) -> (i32, i32) {
    %c0_i32 = arith.constant 0 : i32
    %c0_i32_0 = arith.constant 0 : i32
    %c0_i32_1 = arith.constant 0 : i32
    return %c0_i32, %c0_i32_0 : i32, i32
  }
  func.func @transform_6(%arg0: i32) -> (i32, i32) {
    %c0_i32 = arith.constant 0 : i32
    %c0_i32_0 = arith.constant 0 : i32
    %c0_i32_1 = arith.constant 0 : i32
    return %c0_i32, %c0_i32_0 : i32, i32
  }
  func.func @transform_7(%arg0: i32) -> (i32, i32) {
    %c0_i32 = arith.constant 0 : i32
    %c0_i32_0 = arith.constant 0 : i32
    %c0_i32_1 = arith.constant 0 : i32
    return %c0_i32, %c0_i32_0 : i32, i32
  }
  func.func @transform_8(%arg0: i32) -> (i32, i32) {
    %c0_i32 = arith.constant 0 : i32
    %c0_i32_0 = arith.constant 0 : i32
    %c0_i32_1 = arith.constant 0 : i32
    return %c0_i32, %c0_i32_0 : i32, i32
  }
  func.func @transform_9(%arg0: i32) -> (i32, i32) {
    %c0_i32 = arith.constant 0 : i32
    %c0_i32_0 = arith.constant 0 : i32
    %c0_i32_1 = arith.constant 0 : i32
    return %c0_i32, %c0_i32_0 : i32, i32
  }
  func.func @transform_10(%arg0: i32) -> (i32, i32) {
    %c0_i32 = arith.constant 0 : i32
    %c0_i32_0 = arith.constant 0 : i32
    %c0_i32_1 = arith.constant 0 : i32
    return %c0_i32, %c0_i32_0 : i32, i32
  }
  func.func @transform_11(%arg0: i32) -> (i32, i32) {
    %c0_i32 = arith.constant 0 : i32
    %c0_i32_0 = arith.constant 0 : i32
    %c0_i32_1 = arith.constant 0 : i32
    return %c0_i32, %c0_i32_0 : i32, i32
  }
  func.func @transform_12(%arg0: i32) -> (i32, i32) {
    %c0_i32 = arith.constant 0 : i32
    %c0_i32_0 = arith.constant 0 : i32
    %c0_i32_1 = arith.constant 0 : i32
    return %c0_i32, %c0_i32_0 : i32, i32
  }
  func.func @transform_13(%arg0: i32) -> (i32, i32) {
    %c0_i32 = arith.constant 0 : i32
    %c0_i32_0 = arith.constant 0 : i32
    %c0_i32_1 = arith.constant 0 : i32
    return %c0_i32, %c0_i32_0 : i32, i32
  }
  func.func @transform_14(%arg0: i32) -> (i32, i32) {
    %c0_i32 = arith.constant 0 : i32
    %c0_i32_0 = arith.constant 0 : i32
    %c0_i32_1 = arith.constant 0 : i32
    return %c0_i32, %c0_i32_0 : i32, i32
  }
  func.func @transform_15(%arg0: i32) -> (i32, i32) {
    %c0_i32 = arith.constant 0 : i32
    %c0_i32_0 = arith.constant 0 : i32
    %c0_i32_1 = arith.constant 0 : i32
    return %c0_i32, %c0_i32_0 : i32, i32
  }
  func.func @transform_16(%arg0: i32) -> (i32, i32) {
    %c0_i32 = arith.constant 0 : i32
    %c0_i32_0 = arith.constant 0 : i32
    %c0_i32_1 = arith.constant 0 : i32
    return %c0_i32, %c0_i32_0 : i32, i32
  }
  func.func @transform_17(%arg0: i32) -> (i32, i32, i32) {
    %c0_i32 = arith.constant 0 : i32
    %c0_i32_0 = arith.constant 0 : i32
    %c0_i32_1 = arith.constant 0 : i32
    return %arg0, %c0_i32, %c0_i32_0 : i32, i32, i32
  }
}

</mosaic_0001>

<llo_original>
// kernel: tpu_custom_call.1
$region0: #{tpu_custom_call.1}
  #allocation0 [shape = 'u32[]', space=smem, size = 0x4, offset = 0x4, fixed_abs, tag = 'smem constant byte address 0x4 - core index']
  #allocation1 [shape = 'u32[72,128]{1,0:T(1,128)}', space=vmem, size = 0x9000, scoped, tag = 'internal scratch']
  %s0 = inlined_call_operand.vmem [shape: f32[2,8,32], index: 0, kind: input, shape index: {}]
  %s1 = inlined_call_operand.vmem [shape: f32[2,8,32], index: 1, kind: input, shape index: {}]
  %s2 = inlined_call_operand.vmem [shape: f32[2,1,8], index: 2, kind: input, shape index: {}]
  %s3 = inlined_call_operand.vmem [shape: bf16[32,64], index: 3, kind: input, shape index: {}]
  %s4 = inlined_call_operand.vmem [shape: f32[1,64], index: 4, kind: input, shape index: {}]
  %s5 = inlined_call_operand.vmem [shape: bf16[32,32], index: 5, kind: input, shape index: {}]
  %s6 = inlined_call_operand.vmem [shape: f32[1,32], index: 6, kind: input, shape index: {}]
  %s7 = inlined_call_operand.vmem [shape: bf16[32,32], index: 7, kind: input, shape index: {}]
  %s8 = inlined_call_operand.vmem [shape: f32[1,32], index: 8, kind: input, shape index: {}]
  %s9 = inlined_call_operand.vmem [shape: f32[1,32], index: 9, kind: input, shape index: {}]
  %s10 = inlined_call_operand.vmem [shape: f32[1,32], index: 10, kind: input, shape index: {}]
  %s11 = inlined_call_operand.vmem [shape: bf16[32,256], index: 11, kind: input, shape index: {}]
  %s12 = inlined_call_operand.vmem [shape: f32[1,256], index: 12, kind: input, shape index: {}]
  %s13 = inlined_call_operand.vmem [shape: bf16[256,32], index: 13, kind: input, shape index: {}]
  %s14 = inlined_call_operand.vmem [shape: f32[1,32], index: 14, kind: input, shape index: {}]
  %s15 = inlined_call_operand.vmem [shape: f32[1,32], index: 15, kind: input, shape index: {}]
  %s16 = inlined_call_operand.vmem [shape: f32[1,32], index: 16, kind: input, shape index: {}]
  %s17 = inlined_call_operand.hbm [shape: f32[2,8,32], index: 17, kind: output, shape index: {}]
  %s18 = sld [smem:[#allocation0]]
  $region78: #{tpu_custom_call.1} parent=0
    _
  %s20 = ssub.s32 1, %s18
  %s21 = scalar_select 0, %s20, %s18
  $region1: #{tpu_custom_call.1} parent=0
    #allocation2 [shape = 'u8[8192]{0}', space=vmem, size = 0x2000, scoped, tag = 'output window, operand 0, single buffered']
    #allocation3 [shape = 's32[1]{0}', space=sflag, size = 0x4, scoped, tag = 'scoped memory for tpu_custom_call.1']
    %22 = vsyncpa [#allocation3], 0
    // Predicated region
    $region2: #{tpu_custom_call.1} parent=1 // pred_check
      _
    $region3: #{tpu_custom_call.1} parent=1 // pred_check_branch
      %24 = sbr.rel (0) target = $region5
    $region4: #{tpu_custom_call.1} parent=1 // pred_region
      _
    $region5: #{tpu_custom_call.1} parent=1 // pred_fallthru
      _
    // Predicated region
    $region6: #{tpu_custom_call.1} parent=1 // pred_check
      _
    $region7: #{tpu_custom_call.1} parent=1 // pred_check_branch
      %26 = sbr.rel (0) target = $region9
    $region8: #{tpu_custom_call.1} parent=1 // pred_region
      _
    $region9: #{tpu_custom_call.1} parent=1 // pred_fallthru
      _
    // Predicated region
    $region10: #{tpu_custom_call.1} parent=1 // pred_check
      _
    $region11: #{tpu_custom_call.1} parent=1 // pred_check_branch
      %28 = sbr.rel (0) target = $region13
    $region12: #{tpu_custom_call.1} parent=1 // pred_region
      _
    $region13: #{tpu_custom_call.1} parent=1 // pred_fallthru
      _
    // Predicated region
    $region14: #{tpu_custom_call.1} parent=1 // pred_check
      _
    $region15: #{tpu_custom_call.1} parent=1 // pred_check_branch
      %30 = sbr.rel (0) target = $region17
    $region16: #{tpu_custom_call.1} parent=1 // pred_region
      _
    $region17: #{tpu_custom_call.1} parent=1 // pred_fallthru
      _
    // Predicated region
    $region18: #{tpu_custom_call.1} parent=1 // pred_check
      _
    $region19: #{tpu_custom_call.1} parent=1 // pred_check_branch
      %32 = sbr.rel (0) target = $region21
    $region20: #{tpu_custom_call.1} parent=1 // pred_region
      _
    $region21: #{tpu_custom_call.1} parent=1 // pred_fallthru
      _
    // Predicated region
    $region22: #{tpu_custom_call.1} parent=1 // pred_check
      _
    $region23: #{tpu_custom_call.1} parent=1 // pred_check_branch
      %34 = sbr.rel (0) target = $region25
    $region24: #{tpu_custom_call.1} parent=1 // pred_region
      _
    $region25: #{tpu_custom_call.1} parent=1 // pred_fallthru
      _
    // Predicated region
    $region26: #{tpu_custom_call.1} parent=1 // pred_check
      _
    $region27: #{tpu_custom_call.1} parent=1 // pred_check_branch
      %36 = sbr.rel (0) target = $region29
    $region28: #{tpu_custom_call.1} parent=1 // pred_region
      _
    $region29: #{tpu_custom_call.1} parent=1 // pred_fallthru
      _
    // Predicated region
    $region30: #{tpu_custom_call.1} parent=1 // pred_check
      _
    $region31: #{tpu_custom_call.1} parent=1 // pred_check_branch
      %38 = sbr.rel (0) target = $region33
    $region32: #{tpu_custom_call.1} parent=1 // pred_region
      _
    $region33: #{tpu_custom_call.1} parent=1 // pred_fallthru
      _
    // Predicated region
    $region34: #{tpu_custom_call.1} parent=1 // pred_check
      _
    $region35: #{tpu_custom_call.1} parent=1 // pred_check_branch
      %40 = sbr.rel (0) target = $region37
    $region36: #{tpu_custom_call.1} parent=1 // pred_region
      _
    $region37: #{tpu_custom_call.1} parent=1 // pred_fallthru
      _
    // Predicated region
    $region38: #{tpu_custom_call.1} parent=1 // pred_check
      _
    $region39: #{tpu_custom_call.1} parent=1 // pred_check_branch
      %42 = sbr.rel (0) target = $region41
    $region40: #{tpu_custom_call.1} parent=1 // pred_region
      _
    $region41: #{tpu_custom_call.1} parent=1 // pred_fallthru
      _
    // Predicated region
    $region42: #{tpu_custom_call.1} parent=1 // pred_check
      _
    $region43: #{tpu_custom_call.1} parent=1 // pred_check_branch
      %44 = sbr.rel (0) target = $region45
    $region44: #{tpu_custom_call.1} parent=1 // pred_region
      _
    $region45: #{tpu_custom_call.1} parent=1 // pred_fallthru
      _
    // Predicated region
    $region46: #{tpu_custom_call.1} parent=1 // pred_check
      _
    $region47: #{tpu_custom_call.1} parent=1 // pred_check_branch
      %46 = sbr.rel (0) target = $region49
    $region48: #{tpu_custom_call.1} parent=1 // pred_region
      _
    $region49: #{tpu_custom_call.1} parent=1 // pred_fallthru
      _
    // Predicated region
    $region50: #{tpu_custom_call.1} parent=1 // pred_check
      _
    $region51: #{tpu_custom_call.1} parent=1 // pred_check_branch
      %48 = sbr.rel (0) target = $region53
    $region52: #{tpu_custom_call.1} parent=1 // pred_region
      _
    $region53: #{tpu_custom_call.1} parent=1 // pred_fallthru
      _
    // Predicated region
    $region54: #{tpu_custom_call.1} parent=1 // pred_check
      _
    $region55: #{tpu_custom_call.1} parent=1 // pred_check_branch
      %50 = sbr.rel (0) target = $region57
    $region56: #{tpu_custom_call.1} parent=1 // pred_region
      _
    $region57: #{tpu_custom_call.1} parent=1 // pred_fallthru
      _
    // Predicated region
    $region58: #{tpu_custom_call.1} parent=1 // pred_check
      _
    $region59: #{tpu_custom_call.1} parent=1 // pred_check_branch
      %52 = sbr.rel (0) target = $region61
    $region60: #{tpu_custom_call.1} parent=1 // pred_region
      _
    $region61: #{tpu_custom_call.1} parent=1 // pred_fallthru
      _
    // Predicated region
    $region62: #{tpu_custom_call.1} parent=1 // pred_check
      _
    $region63: #{tpu_custom_call.1} parent=1 // pred_check_branch
      %54 = sbr.rel (0) target = $region65
    $region64: #{tpu_custom_call.1} parent=1 // pred_region
      _
    $region65: #{tpu_custom_call.1} parent=1 // pred_fallthru
      _
    // Predicated region
    $region66: #{tpu_custom_call.1} parent=1 // pred_check
      _
    $region67: #{tpu_custom_call.1} parent=1 // pred_check_branch
      %56 = sbr.rel (0) target = $region69
    $region68: #{tpu_custom_call.1} parent=1 // pred_region
      _
    $region69: #{tpu_custom_call.1} parent=1 // pred_fallthru
      _
    %v58 = vld [vmem:[%s0] sm:$0xff]
    %v59 = vld [vmem:[%s0 + $0x8] sm:$0xff]
    %v60 = vld [vmem:[%s1] sm:$0xff]
    %v61 = vld [vmem:[%s1 + $0x8] sm:$0xff]
    %v62 = vadd.f32 %v58, %v60
    %v63 = vadd.f32 %v59, %v61
    %v64 = vpack.c.bf16 %v63, %v62
    %v65 = vld [vmem:[%s3] sm:$0xf]
    %v66 = vld [vmem:[%s3 + $0x4] sm:$0xf]
    %v67 = vld [vmem:[%s3 + $0x8] sm:$0xf]
    %v68 = vld [vmem:[%s3 + $0xc] sm:$0xf]
    %v69 = vld [vmem:[%s4] sm:$0x1]
    %v71 = vperm.slane %v69, 0
    %v77 = vunpack.c.l.b16 %v65
    %v78 = vunpack.c.l.b16 %v66
    %v79 = vunpack.c.l.b16 %v67
    %v80 = vunpack.c.l.b16 %v68
    %v81 = vpack.c.b16 %v78, %v77
    %v82 = vpack.c.b16 %v80, %v79
    %vm85 = vcmask 261120
    %v87 = vsel %vm85, %v64, 0
    %89 = vmatpush.bf16.msra.mxu0 0
    %90 = vmatpush.bf16.msra.mxu0 0
    %91 = vmatpush.bf16.msra.mxu0 0
    %92 = vmatpush.bf16.msra.mxu0 0
    %93 = vmatpush.bf16.msra.mxu0 0
    %94 = vmatpush.bf16.msra.mxu0 0
    %95 = vmatpush.bf16.msra.mxu0 %v82
    %96 = vmatpush.bf16.msra.mxu0 %v81
    %97 = vmatmul.bf16.gmra.mxu0 %v87
    %v98 = vpop.f32.mrf.mxu0
    %v99 = vadd.f32 %v71, %v98
    %v100 = vpop.f32.mrf.mxu0
    %v101 = vadd.f32 %v71, %v100
    %102 = vdwg.mxu0
    %v103 = vpack.c.bf16 %v59, %v58
    %v104 = vld [vmem:[%s5] sm:$0xf]
    %v105 = vld [vmem:[%s5 + $0x4] sm:$0xf]
    %v106 = vld [vmem:[%s5 + $0x8] sm:$0xf]
    %v107 = vld [vmem:[%s5 + $0xc] sm:$0xf]
    %v108 = vld [vmem:[%s6] sm:$0x1]
    %v110 = vperm.slane %v108, 0
    %v116 = vunpack.c.l.b16 %v104
    %v117 = vunpack.c.l.b16 %v105
    %v118 = vunpack.c.l.b16 %v106
    %v119 = vunpack.c.l.b16 %v107
    %v120 = vpack.c.b16 %v117, %v116
    %v121 = vpack.c.b16 %v119, %v118
    %v125 = vsel %vm85, %v103, 0
    %127 = vmatpush.bf16.msra.mxu0 0
    %128 = vmatpush.bf16.msra.mxu0 0
    %129 = vmatpush.bf16.msra.mxu0 0
    %130 = vmatpush.bf16.msra.mxu0 0
    %131 = vmatpush.bf16.msra.mxu0 0
    %132 = vmatpush.bf16.msra.mxu0 0
    %133 = vmatpush.bf16.msra.mxu0 %v121
    %134 = vmatpush.bf16.msra.mxu0 %v120
    %135 = vmatmul.bf16.gmra.mxu0 %v125
    %v136 = vpop.f32.mrf.mxu0
    %v137 = vadd.f32 %v110, %v136
    %v138 = vpop.f32.mrf.mxu0
    %v139 = vadd.f32 %v110, %v138
    %140 = vdwg.mxu0
    %v141 = vpack.c.bf16 %v99, %v99
    %v142 = vpack.c.bf16 %v101, %v101
    %v143 = vpack.c.bf16 %v137, %v137
    %v144 = vpack.c.bf16 %v139, %v139
    %v145 = vld [vmem:[%s2] sm:$0x1]
    %v146 = vld [vmem:[%s2 + $0x1] sm:$0x1]
    %v149 = vperm.slane %v145, 0
    %v150 = vperm.slane %v146, 0
    %v154 = vunpack.c.l.b16 %v141
    %v155 = vpack.c.b16 %v154, %v154
    %156 = vrot.lane.b32.xlu0 %v155, 96
    %v157 = vpop.permute.xlu0 %156
    %vm158 = vcmask 31744
    %v160 = vsel %vm158, %v141, 0
    %v163 = vsel %vm158, %v157, 0
    %165 = vmatpush.bf16.xpose.msra.mxu0 0
    %166 = vmatpush.bf16.xpose.msra.mxu0 0
    %167 = vmatpush.bf16.xpose.msra.mxu0 0
    %168 = vmatpush.bf16.xpose.msra.mxu0 0
    %169 = vmatpush.bf16.xpose.msra.mxu0 0
    %170 = vmatpush.bf16.xpose.msra.mxu0 0
    %171 = vmatpush.bf16.xpose.msra.mxu0 0
    %172 = vmatpush.bf16.xpose.msra.mxu0 %v163
    %173 = vmatmul.bf16.gmra.mxu0 %v160
    %v174 = vpop.f32.mrf.mxu0
    %v175 = vadd.f32 %v149, %v174
    %v176 = vpop.f32.mrf.mxu0
    %177 = vdwg.mxu0
    %v179 = vunpack.c.l.b16 %v142
    %v180 = vpack.c.b16 %v179, %v179
    %181 = vrot.lane.b32.xlu0 %v180, 96
    %v182 = vpop.permute.xlu0 %181
    %v184 = vsel %vm158, %v142, 0
    %v187 = vsel %vm158, %v182, 0
    %189 = vmatpush.bf16.xpose.msra.mxu0 0
    %190 = vmatpush.bf16.xpose.msra.mxu0 0
    %191 = vmatpush.bf16.xpose.msra.mxu0 0
    %192 = vmatpush.bf16.xpose.msra.mxu0 0
    %193 = vmatpush.bf16.xpose.msra.mxu0 0
    %194 = vmatpush.bf16.xpose.msra.mxu0 0
    %195 = vmatpush.bf16.xpose.msra.mxu0 0
    %196 = vmatpush.bf16.xpose.msra.mxu0 %v187
    %197 = vmatmul.bf16.gmra.mxu0 %v184
    %v198 = vpop.f32.mrf.mxu0
    %v199 = vadd.f32 %v150, %v198
    %v200 = vpop.f32.mrf.mxu0
    %201 = vdwg.mxu0
    %vm202 = vcmask 64512
    %v203 = vsel %vm202, %v175, -inf
    %204 = vmax.xlane.f32.xlu0 %v203
    %v205 = vpop.xlane.xlu0 %204
    %v206 = vsel %vm202, %v199, -inf
    %207 = vmax.xlane.f32.xlu0 %v206
    %v208 = vpop.xlane.xlu0 %207
    %v209 = vsub.f32 %v175, %v205
    %v210 = vsub.f32 %v199, %v208
    %v211 = vmul.f32 %v209, 1.442695
    %v212 = vpow.pop %v211
    %v213 = vmul.f32 %v210, 1.442695
    %v214 = vpow.pop %v213
    %v215 = vsel %vm202, %v212, 0.0
    %216 = vadd.xlane.f32.xlu0 %v215
    %v217 = vpop.xlane.xlu0 %216
    %v218 = vsel %vm202, %v214, 0.0
    %219 = vadd.xlane.f32.xlu0 %v218
    %v220 = vpop.xlane.xlu0 %219
    %v221 = vrcp.pop %v217
    %v222 = vrcp.pop %v220
    %v223 = vmul.f32 %v212, %v221
    %v224 = vmul.f32 %v214, %v222
    %v225 = vpack.c.bf16 %v223, %v223
    %v226 = vpack.c.bf16 %v224, %v224
    %v228 = vsel %vm202, %v225, 0
    %vm230 = vcmask 1043456
    %v232 = vsel %vm230, %v143, 0
    %234 = vmatpush.bf16.msra.mxu0 0
    %235 = vmatpush.bf16.msra.mxu0 0
    %236 = vmatpush.bf16.msra.mxu0 0
    %237 = vmatpush.bf16.msra.mxu0 0
    %238 = vmatpush.bf16.msra.mxu0 0
    %239 = vmatpush.bf16.msra.mxu0 0
    %240 = vmatpush.bf16.msra.mxu0 0
    %241 = vmatpush.bf16.msra.mxu0 %v232
    %242 = vmatmul.bf16.gmra.mxu0 %v228
    %v243 = vpop.f32.mrf.mxu0
    %v244 = vadd.f32 0.0, %v243
    %v245 = vpop.f32.mrf.mxu0
    %246 = vdwg.mxu0
    %v248 = vsel %vm202, %v226, 0
    %v251 = vsel %vm230, %v144, 0
    %253 = vmatpush.bf16.msra.mxu0 0
    %254 = vmatpush.bf16.msra.mxu0 0
    %255 = vmatpush.bf16.msra.mxu0 0
    %256 = vmatpush.bf16.msra.mxu0 0
    %257 = vmatpush.bf16.msra.mxu0 0
    %258 = vmatpush.bf16.msra.mxu0 0
    %259 = vmatpush.bf16.msra.mxu0 0
    %260 = vmatpush.bf16.msra.mxu0 %v251
    %261 = vmatmul.bf16.gmra.mxu0 %v248
    %v262 = vpop.f32.mrf.mxu0
    %v263 = vadd.f32 0.0, %v262
    %v264 = vpop.f32.mrf.mxu0
    %265 = vdwg.mxu0
    %266 = vrot.lane.b32.xlu0 %v155, 124
    %v267 = vpop.permute.xlu0 %266
    %268 = vrot.lane.b32.xlu0 %v155, 92
    %v269 = vpop.permute.xlu0 %268
    %v271 = vsel %vm158, %v267, 0
    %v274 = vsel %vm158, %v269, 0
    %276 = vmatpush.bf16.xpose.msra.mxu0 0
    %277 = vmatpush.bf16.xpose.msra.mxu0 0
    %278 = vmatpush.bf16.xpose.msra.mxu0 0
    %279 = vmatpush.bf16.xpose.msra.mxu0 0
    %280 = vmatpush.bf16.xpose.msra.mxu0 0
    %281 = vmatpush.bf16.xpose.msra.mxu0 0
    %282 = vmatpush.bf16.xpose.msra.mxu0 0
    %283 = vmatpush.bf16.xpose.msra.mxu0 %v274
    %284 = vmatmul.bf16.gmra.mxu0 %v271
    %v285 = vpop.f32.mrf.mxu0
    %v286 = vadd.f32 %v149, %v285
    %v287 = vpop.f32.mrf.mxu0
    %288 = vdwg.mxu0
    %289 = vrot.lane.b32.xlu0 %v180, 124
    %v290 = vpop.permute.xlu0 %289
    %291 = vrot.lane.b32.xlu0 %v180, 92
    %v292 = vpop.permute.xlu0 %291
    %v294 = vsel %vm158, %v290, 0
    %v297 = vsel %vm158, %v292, 0
    %299 = vmatpush.bf16.xpose.msra.mxu0 0
    %300 = vmatpush.bf16.xpose.msra.mxu0 0
    %301 = vmatpush.bf16.xpose.msra.mxu0 0
    %302 = vmatpush.bf16.xpose.msra.mxu0 0
    %303 = vmatpush.bf16.xpose.msra.mxu0 0
    %304 = vmatpush.bf16.xpose.msra.mxu0 0
    %305 = vmatpush.bf16.xpose.msra.mxu0 0
    %306 = vmatpush.bf16.xpose.msra.mxu0 %v297
    %307 = vmatmul.bf16.gmra.mxu0 %v294
    %v308 = vpop.f32.mrf.mxu0
    %v309 = vadd.f32 %v150, %v308
    %v310 = vpop.f32.mrf.mxu0
    %311 = vdwg.mxu0
    %v312 = vsel %vm202, %v286, -inf
    %313 = vmax.xlane.f32.xlu0 %v312
    %v314 = vpop.xlane.xlu0 %313
    %v315 = vsel %vm202, %v309, -inf
    %316 = vmax.xlane.f32.xlu0 %v315
    %v317 = vpop.xlane.xlu0 %316
    %v318 = vsub.f32 %v286, %v314
    %v319 = vsub.f32 %v309, %v317
    %v320 = vmul.f32 %v318, 1.442695
    %v321 = vpow.pop %v320
    %v322 = vmul.f32 %v319, 1.442695
    %v323 = vpow.pop %v322
    %v324 = vsel %vm202, %v321, 0.0
    %325 = vadd.xlane.f32.xlu0 %v324
    %v326 = vpop.xlane.xlu0 %325
    %v327 = vsel %vm202, %v323, 0.0
    %328 = vadd.xlane.f32.xlu0 %v327
    %v329 = vpop.xlane.xlu0 %328
    %v330 = vrcp.pop %v326
    %v331 = vrcp.pop %v329
    %v332 = vmul.f32 %v321, %v330
    %v333 = vmul.f32 %v323, %v331
    %v334 = vpack.c.bf16 %v332, %v332
    %v335 = vpack.c.bf16 %v333, %v333
    %v337 = vunpack.c.l.b16 %v143
    %v338 = vpack.c.b16 %v337, %v337
    %339 = vrot.lane.b32.xlu0 %v338, 124
    %v340 = vpop.permute.xlu0 %339
    %v342 = vsel %vm202, %v334, 0
    %v345 = vsel %vm230, %v340, 0
    %347 = vmatpush.bf16.msra.mxu0 0
    %348 = vmatpush.bf16.msra.mxu0 0
    %349 = vmatpush.bf16.msra.mxu0 0
    %350 = vmatpush.bf16.msra.mxu0 0
    %351 = vmatpush.bf16.msra.mxu0 0
    %352 = vmatpush.bf16.msra.mxu0 0
    %353 = vmatpush.bf16.msra.mxu0 0
    %354 = vmatpush.bf16.msra.mxu0 %v345
    %355 = vmatmul.bf16.gmra.mxu0 %v342
    %v356 = vpop.f32.mrf.mxu0
    %v357 = vadd.f32 0.0, %v356
    %v358 = vpop.f32.mrf.mxu0
    %359 = vdwg.mxu0
    %v361 = vunpack.c.l.b16 %v144
    %v362 = vpack.c.b16 %v361, %v361
    %363 = vrot.lane.b32.xlu0 %v362, 124
    %v364 = vpop.permute.xlu0 %363
    %v366 = vsel %vm202, %v335, 0
    %v369 = vsel %vm230, %v364, 0
    %371 = vmatpush.bf16.msra.mxu0 0
    %372 = vmatpush.bf16.msra.mxu0 0
    %373 = vmatpush.bf16.msra.mxu0 0
    %374 = vmatpush.bf16.msra.mxu0 0
    %375 = vmatpush.bf16.msra.mxu0 0
    %376 = vmatpush.bf16.msra.mxu0 0
    %377 = vmatpush.bf16.msra.mxu0 0
    %378 = vmatpush.bf16.msra.mxu0 %v369
    %379 = vmatmul.bf16.gmra.mxu0 %v366
    %v380 = vpop.f32.mrf.mxu0
    %v381 = vadd.f32 0.0, %v380
    %v382 = vpop.f32.mrf.mxu0
    %383 = vdwg.mxu0
    %384 = vrot.lane.b32.xlu0 %v155, 120
    %v385 = vpop.permute.xlu0 %384
    %386 = vrot.lane.b32.xlu0 %v155, 88
    %v387 = vpop.permute.xlu0 %386
    %v389 = vsel %vm158, %v385, 0
    %v392 = vsel %vm158, %v387, 0
    %394 = vmatpush.bf16.xpose.msra.mxu0 0
    %395 = vmatpush.bf16.xpose.msra.mxu0 0
    %396 = vmatpush.bf16.xpose.msra.mxu0 0
    %397 = vmatpush.bf16.xpose.msra.mxu0 0
    %398 = vmatpush.bf16.xpose.msra.mxu0 0
    %399 = vmatpush.bf16.xpose.msra.mxu0 0
    %400 = vmatpush.bf16.xpose.msra.mxu0 0
    %401 = vmatpush.bf16.xpose.msra.mxu0 %v392
    %402 = vmatmul.bf16.gmra.mxu0 %v389
    %v403 = vpop.f32.mrf.mxu0
    %v404 = vadd.f32 %v149, %v403
    %v405 = vpop.f32.mrf.mxu0
    %406 = vdwg.mxu0
    %407 = vrot.lane.b32.xlu0 %v180, 120
    %v408 = vpop.permute.xlu0 %407
    %409 = vrot.lane.b32.xlu0 %v180, 88
    %v410 = vpop.permute.xlu0 %409
    %v412 = vsel %vm158, %v408, 0
    %v415 = vsel %vm158, %v410, 0
    %417 = vmatpush.bf16.xpose.msra.mxu0 0
    %418 = vmatpush.bf16.xpose.msra.mxu0 0
    %419 = vmatpush.bf16.xpose.msra.mxu0 0
    %420 = vmatpush.bf16.xpose.msra.mxu0 0
    %421 = vmatpush.bf16.xpose.msra.mxu0 0
    %422 = vmatpush.bf16.xpose.msra.mxu0 0
    %423 = vmatpush.bf16.xpose.msra.mxu0 0
    %424 = vmatpush.bf16.xpose.msra.mxu0 %v415
    %425 = vmatmul.bf16.gmra.mxu0 %v412
    %v426 = vpop.f32.mrf.mxu0
    %v427 = vadd.f32 %v150, %v426
    %v428 = vpop.f32.mrf.mxu0
    %429 = vdwg.mxu0
    %v430 = vsel %vm202, %v404, -inf
    %431 = vmax.xlane.f32.xlu0 %v430
    %v432 = vpop.xlane.xlu0 %431
    %v433 = vsel %vm202, %v427, -inf
    %434 = vmax.xlane.f32.xlu0 %v433
    %v435 = vpop.xlane.xlu0 %434
    %v436 = vsub.f32 %v404, %v432
    %v437 = vsub.f32 %v427, %v435
    %v438 = vmul.f32 %v436, 1.442695
    %v439 = vpow.pop %v438
    %v440 = vmul.f32 %v437, 1.442695
    %v441 = vpow.pop %v440
    %v442 = vsel %vm202, %v439, 0.0
    %443 = vadd.xlane.f32.xlu0 %v442
    %v444 = vpop.xlane.xlu0 %443
    %v445 = vsel %vm202, %v441, 0.0
    %446 = vadd.xlane.f32.xlu0 %v445
    %v447 = vpop.xlane.xlu0 %446
    %v448 = vrcp.pop %v444
    %v449 = vrcp.pop %v447
    %v450 = vmul.f32 %v439, %v448
    %v451 = vmul.f32 %v441, %v449
    %v452 = vpack.c.bf16 %v450, %v450
    %v453 = vpack.c.bf16 %v451, %v451
    %454 = vrot.lane.b32.xlu0 %v338, 120
    %v455 = vpop.permute.xlu0 %454
    %v457 = vsel %vm202, %v452, 0
    %v460 = vsel %vm230, %v455, 0
    %462 = vmatpush.bf16.msra.mxu0 0
    %463 = vmatpush.bf16.msra.mxu0 0
    %464 = vmatpush.bf16.msra.mxu0 0
    %465 = vmatpush.bf16.msra.mxu0 0
    %466 = vmatpush.bf16.msra.mxu0 0
    %467 = vmatpush.bf16.msra.mxu0 0
    %468 = vmatpush.bf16.msra.mxu0 0
    %469 = vmatpush.bf16.msra.mxu0 %v460
    %470 = vmatmul.bf16.gmra.mxu0 %v457
    %v471 = vpop.f32.mrf.mxu0
    %v472 = vadd.f32 0.0, %v471
    %v473 = vpop.f32.mrf.mxu0
    %474 = vdwg.mxu0
    %475 = vrot.lane.b32.xlu0 %v362, 120
    %v476 = vpop.permute.xlu0 %475
    %v478 = vsel %vm202, %v453, 0
    %v481 = vsel %vm230, %v476, 0
    %483 = vmatpush.bf16.msra.mxu0 0
    %484 = vmatpush.bf16.msra.mxu0 0
    %485 = vmatpush.bf16.msra.mxu0 0
    %486 = vmatpush.bf16.msra.mxu0 0
    %487 = vmatpush.bf16.msra.mxu0 0
    %488 = vmatpush.bf16.msra.mxu0 0
    %489 = vmatpush.bf16.msra.mxu0 0
    %490 = vmatpush.bf16.msra.mxu0 %v481
    %491 = vmatmul.bf16.gmra.mxu0 %v478
    %v492 = vpop.f32.mrf.mxu0
    %v493 = vadd.f32 0.0, %v492
    %v494 = vpop.f32.mrf.mxu0
    %495 = vdwg.mxu0
    %496 = vrot.lane.b32.xlu0 %v155, 116
    %v497 = vpop.permute.xlu0 %496
    %498 = vrot.lane.b32.xlu0 %v155, 84
    %v499 = vpop.permute.xlu0 %498
    %v501 = vsel %vm158, %v497, 0
    %v504 = vsel %vm158, %v499, 0
    %506 = vmatpush.bf16.xpose.msra.mxu0 0
    %507 = vmatpush.bf16.xpose.msra.mxu0 0
    %508 = vmatpush.bf16.xpose.msra.mxu0 0
    %509 = vmatpush.bf16.xpose.msra.mxu0 0
    %510 = vmatpush.bf16.xpose.msra.mxu0 0
    %511 = vmatpush.bf16.xpose.msra.mxu0 0
    %512 = vmatpush.bf16.xpose.msra.mxu0 0
    %513 = vmatpush.bf16.xpose.msra.mxu0 %v504
    %514 = vmatmul.bf16.gmra.mxu0 %v501
    %v515 = vpop.f32.mrf.mxu0
    %v516 = vadd.f32 %v149, %v515
    %v517 = vpop.f32.mrf.mxu0
    %518 = vdwg.mxu0
    %519 = vrot.lane.b32.xlu0 %v180, 116
    %v520 = vpop.permute.xlu0 %519
    %521 = vrot.lane.b32.xlu0 %v180, 84
    %v522 = vpop.permute.xlu0 %521
    %v524 = vsel %vm158, %v520, 0
    %v527 = vsel %vm158, %v522, 0
    %529 = vmatpush.bf16.xpose.msra.mxu0 0
    %530 = vmatpush.bf16.xpose.msra.mxu0 0
    %531 = vmatpush.bf16.xpose.msra.mxu0 0
    %532 = vmatpush.bf16.xpose.msra.mxu0 0
    %533 = vmatpush.bf16.xpose.msra.mxu0 0
    %534 = vmatpush.bf16.xpose.msra.mxu0 0
    %535 = vmatpush.bf16.xpose.msra.mxu0 0
    %536 = vmatpush.bf16.xpose.msra.mxu0 %v527
    %537 = vmatmul.bf16.gmra.mxu0 %v524
    %v538 = vpop.f32.mrf.mxu0
    %v539 = vadd.f32 %v150, %v538
    %v540 = vpop.f32.mrf.mxu0
    %541 = vdwg.mxu0
    %v542 = vsel %vm202, %v516, -inf
    %543 = vmax.xlane.f32.xlu0 %v542
    %v544 = vpop.xlane.xlu0 %543
    %v545 = vsel %vm202, %v539, -inf
    %546 = vmax.xlane.f32.xlu0 %v545
    %v547 = vpop.xlane.xlu0 %546
    %v548 = vsub.f32 %v516, %v544
    %v549 = vsub.f32 %v539, %v547
    %v550 = vmul.f32 %v548, 1.442695
    %v551 = vpow.pop %v550
    %v552 = vmul.f32 %v549, 1.442695
    %v553 = vpow.pop %v552
    %v554 = vsel %vm202, %v551, 0.0
    %555 = vadd.xlane.f32.xlu0 %v554
    %v556 = vpop.xlane.xlu0 %555
    %v557 = vsel %vm202, %v553, 0.0
    %558 = vadd.xlane.f32.xlu0 %v557
    %v559 = vpop.xlane.xlu0 %558
    %v560 = vrcp.pop %v556
    %v561 = vrcp.pop %v559
    %v562 = vmul.f32 %v551, %v560
    %v563 = vmul.f32 %v553, %v561
    %v564 = vpack.c.bf16 %v562, %v562
    %v565 = vpack.c.bf16 %v563, %v563
    %566 = vrot.lane.b32.xlu0 %v338, 116
    %v567 = vpop.permute.xlu0 %566
    %v569 = vsel %vm202, %v564, 0
    %v572 = vsel %vm230, %v567, 0
    %574 = vmatpush.bf16.msra.mxu0 0
    %575 = vmatpush.bf16.msra.mxu0 0
    %576 = vmatpush.bf16.msra.mxu0 0
    %577 = vmatpush.bf16.msra.mxu0 0
    %578 = vmatpush.bf16.msra.mxu0 0
    %579 = vmatpush.bf16.msra.mxu0 0
    %580 = vmatpush.bf16.msra.mxu0 0
    %581 = vmatpush.bf16.msra.mxu0 %v572
    %582 = vmatmul.bf16.gmra.mxu0 %v569
    %v583 = vpop.f32.mrf.mxu0
    %v584 = vadd.f32 0.0, %v583
    %v585 = vpop.f32.mrf.mxu0
    %586 = vdwg.mxu0
    %587 = vrot.lane.b32.xlu0 %v362, 116
    %v588 = vpop.permute.xlu0 %587
    %v590 = vsel %vm202, %v565, 0
    %v593 = vsel %vm230, %v588, 0
    %595 = vmatpush.bf16.msra.mxu0 0
    %596 = vmatpush.bf16.msra.mxu0 0
    %597 = vmatpush.bf16.msra.mxu0 0
    %598 = vmatpush.bf16.msra.mxu0 0
    %599 = vmatpush.bf16.msra.mxu0 0
    %600 = vmatpush.bf16.msra.mxu0 0
    %601 = vmatpush.bf16.msra.mxu0 0
    %602 = vmatpush.bf16.msra.mxu0 %v593
    %603 = vmatmul.bf16.gmra.mxu0 %v590
    %v604 = vpop.f32.mrf.mxu0
    %v605 = vadd.f32 0.0, %v604
    %v606 = vpop.f32.mrf.mxu0
    %607 = vdwg.mxu0
    %608 = vrot.lane.b32.xlu0 %v155, 112
    %v609 = vpop.permute.xlu0 %608
    %610 = vrot.lane.b32.xlu0 %v155, 80
    %v611 = vpop.permute.xlu0 %610
    %v613 = vsel %vm158, %v609, 0
    %v616 = vsel %vm158, %v611, 0
    %618 = vmatpush.bf16.xpose.msra.mxu0 0
    %619 = vmatpush.bf16.xpose.msra.mxu0 0
    %620 = vmatpush.bf16.xpose.msra.mxu0 0
    %621 = vmatpush.bf16.xpose.msra.mxu0 0
    %622 = vmatpush.bf16.xpose.msra.mxu0 0
    %623 = vmatpush.bf16.xpose.msra.mxu0 0
    %624 = vmatpush.bf16.xpose.msra.mxu0 0
    %625 = vmatpush.bf16.xpose.msra.mxu0 %v616
    %626 = vmatmul.bf16.gmra.mxu0 %v613
    %v627 = vpop.f32.mrf.mxu0
    %v628 = vadd.f32 %v149, %v627
    %v629 = vpop.f32.mrf.mxu0
    %630 = vdwg.mxu0
    %631 = vrot.lane.b32.xlu0 %v180, 112
    %v632 = vpop.permute.xlu0 %631
    %633 = vrot.lane.b32.xlu0 %v180, 80
    %v634 = vpop.permute.xlu0 %633
    %v636 = vsel %vm158, %v632, 0
    %v639 = vsel %vm158, %v634, 0
    %641 = vmatpush.bf16.xpose.msra.mxu0 0
    %642 = vmatpush.bf16.xpose.msra.mxu0 0
    %643 = vmatpush.bf16.xpose.msra.mxu0 0
    %644 = vmatpush.bf16.xpose.msra.mxu0 0
    %645 = vmatpush.bf16.xpose.msra.mxu0 0
    %646 = vmatpush.bf16.xpose.msra.mxu0 0
    %647 = vmatpush.bf16.xpose.msra.mxu0 0
    %648 = vmatpush.bf16.xpose.msra.mxu0 %v639
    %649 = vmatmul.bf16.gmra.mxu0 %v636
    %v650 = vpop.f32.mrf.mxu0
    %v651 = vadd.f32 %v150, %v650
    %v652 = vpop.f32.mrf.mxu0
    %653 = vdwg.mxu0
    %v654 = vsel %vm202, %v628, -inf
    %655 = vmax.xlane.f32.xlu0 %v654
    %v656 = vpop.xlane.xlu0 %655
    %v657 = vsel %vm202, %v651, -inf
    %658 = vmax.xlane.f32.xlu0 %v657
    %v659 = vpop.xlane.xlu0 %658
    %v660 = vsub.f32 %v628, %v656
    %v661 = vsub.f32 %v651, %v659
    %v662 = vmul.f32 %v660, 1.442695
    %v663 = vpow.pop %v662
    %v664 = vmul.f32 %v661, 1.442695
    %v665 = vpow.pop %v664
    %v666 = vsel %vm202, %v663, 0.0
    %667 = vadd.xlane.f32.xlu0 %v666
    %v668 = vpop.xlane.xlu0 %667
    %v669 = vsel %vm202, %v665, 0.0
    %670 = vadd.xlane.f32.xlu0 %v669
    %v671 = vpop.xlane.xlu0 %670
    %v672 = vrcp.pop %v668
    %v673 = vrcp.pop %v671
    %v674 = vmul.f32 %v663, %v672
    %v675 = vmul.f32 %v665, %v673
    %v676 = vpack.c.bf16 %v674, %v674
    %v677 = vpack.c.bf16 %v675, %v675
    %678 = vrot.lane.b32.xlu0 %v338, 112
    %v679 = vpop.permute.xlu0 %678
    %v681 = vsel %vm202, %v676, 0
    %v684 = vsel %vm230, %v679, 0
    %686 = vmatpush.bf16.msra.mxu0 0
    %687 = vmatpush.bf16.msra.mxu0 0
    %688 = vmatpush.bf16.msra.mxu0 0
    %689 = vmatpush.bf16.msra.mxu0 0
    %690 = vmatpush.bf16.msra.mxu0 0
    %691 = vmatpush.bf16.msra.mxu0 0
    %692 = vmatpush.bf16.msra.mxu0 0
    %693 = vmatpush.bf16.msra.mxu0 %v684
    %694 = vmatmul.bf16.gmra.mxu0 %v681
    %v695 = vpop.f32.mrf.mxu0
    %v696 = vadd.f32 0.0, %v695
    %v697 = vpop.f32.mrf.mxu0
    %698 = vdwg.mxu0
    %699 = vrot.lane.b32.xlu0 %v362, 112
    %v700 = vpop.permute.xlu0 %699
    %v702 = vsel %vm202, %v677, 0
    %v705 = vsel %vm230, %v700, 0
    %707 = vmatpush.bf16.msra.mxu0 0
    %708 = vmatpush.bf16.msra.mxu0 0
    %709 = vmatpush.bf16.msra.mxu0 0
    %710 = vmatpush.bf16.msra.mxu0 0
    %711 = vmatpush.bf16.msra.mxu0 0
    %712 = vmatpush.bf16.msra.mxu0 0
    %713 = vmatpush.bf16.msra.mxu0 0
    %714 = vmatpush.bf16.msra.mxu0 %v705
    %715 = vmatmul.bf16.gmra.mxu0 %v702
    %v716 = vpop.f32.mrf.mxu0
    %v717 = vadd.f32 0.0, %v716
    %v718 = vpop.f32.mrf.mxu0
    %719 = vdwg.mxu0
    %720 = vrot.lane.b32.xlu0 %v155, 108
    %v721 = vpop.permute.xlu0 %720
    %722 = vrot.lane.b32.xlu0 %v155, 76
    %v723 = vpop.permute.xlu0 %722
    %v725 = vsel %vm158, %v721, 0
    %v728 = vsel %vm158, %v723, 0
    %730 = vmatpush.bf16.xpose.msra.mxu0 0
    %731 = vmatpush.bf16.xpose.msra.mxu0 0
    %732 = vmatpush.bf16.xpose.msra.mxu0 0
    %733 = vmatpush.bf16.xpose.msra.mxu0 0
    %734 = vmatpush.bf16.xpose.msra.mxu0 0
    %735 = vmatpush.bf16.xpose.msra.mxu0 0
    %736 = vmatpush.bf16.xpose.msra.mxu0 0
    %737 = vmatpush.bf16.xpose.msra.mxu0 %v728
    %738 = vmatmul.bf16.gmra.mxu0 %v725
    %v739 = vpop.f32.mrf.mxu0
    %v740 = vadd.f32 %v149, %v739
    %v741 = vpop.f32.mrf.mxu0
    %742 = vdwg.mxu0
    %743 = vrot.lane.b32.xlu0 %v180, 108
    %v744 = vpop.permute.xlu0 %743
    %745 = vrot.lane.b32.xlu0 %v180, 76
    %v746 = vpop.permute.xlu0 %745
    %v748 = vsel %vm158, %v744, 0
    %v751 = vsel %vm158, %v746, 0
    %753 = vmatpush.bf16.xpose.msra.mxu0 0
    %754 = vmatpush.bf16.xpose.msra.mxu0 0
    %755 = vmatpush.bf16.xpose.msra.mxu0 0
    %756 = vmatpush.bf16.xpose.msra.mxu0 0
    %757 = vmatpush.bf16.xpose.msra.mxu0 0
    %758 = vmatpush.bf16.xpose.msra.mxu0 0
    %759 = vmatpush.bf16.xpose.msra.mxu0 0
    %760 = vmatpush.bf16.xpose.msra.mxu0 %v751
    %761 = vmatmul.bf16.gmra.mxu0 %v748
    %v762 = vpop.f32.mrf.mxu0
    %v763 = vadd.f32 %v150, %v762
    %v764 = vpop.f32.mrf.mxu0
    %765 = vdwg.mxu0
    %v766 = vsel %vm202, %v740, -inf
    %767 = vmax.xlane.f32.xlu0 %v766
    %v768 = vpop.xlane.xlu0 %767
    %v769 = vsel %vm202, %v763, -inf
    %770 = vmax.xlane.f32.xlu0 %v769
    %v771 = vpop.xlane.xlu0 %770
    %v772 = vsub.f32 %v740, %v768
    %v773 = vsub.f32 %v763, %v771
    %v774 = vmul.f32 %v772, 1.442695
    %v775 = vpow.pop %v774
    %v776 = vmul.f32 %v773, 1.442695
    %v777 = vpow.pop %v776
    %v778 = vsel %vm202, %v775, 0.0
    %779 = vadd.xlane.f32.xlu0 %v778
    %v780 = vpop.xlane.xlu0 %779
    %v781 = vsel %vm202, %v777, 0.0
    %782 = vadd.xlane.f32.xlu0 %v781
    %v783 = vpop.xlane.xlu0 %782
    %v784 = vrcp.pop %v780
    %v785 = vrcp.pop %v783
    %v786 = vmul.f32 %v775, %v784
    %v787 = vmul.f32 %v777, %v785
    %v788 = vpack.c.bf16 %v786, %v786
    %v789 = vpack.c.bf16 %v787, %v787
    %790 = vrot.lane.b32.xlu0 %v338, 108
    %v791 = vpop.permute.xlu0 %790
    %v793 = vsel %vm202, %v788, 0
    %v796 = vsel %vm230, %v791, 0
    %798 = vmatpush.bf16.msra.mxu0 0
    %799 = vmatpush.bf16.msra.mxu0 0
    %800 = vmatpush.bf16.msra.mxu0 0
    %801 = vmatpush.bf16.msra.mxu0 0
    %802 = vmatpush.bf16.msra.mxu0 0
    %803 = vmatpush.bf16.msra.mxu0 0
    %804 = vmatpush.bf16.msra.mxu0 0
    %805 = vmatpush.bf16.msra.mxu0 %v796
    %806 = vmatmul.bf16.gmra.mxu0 %v793
    %v807 = vpop.f32.mrf.mxu0
    %v808 = vadd.f32 0.0, %v807
    %v809 = vpop.f32.mrf.mxu0
    %810 = vdwg.mxu0
    %811 = vrot.lane.b32.xlu0 %v362, 108
    %v812 = vpop.permute.xlu0 %811
    %v814 = vsel %vm202, %v789, 0
    %v817 = vsel %vm230, %v812, 0
    %819 = vmatpush.bf16.msra.mxu0 0
    %820 = vmatpush.bf16.msra.mxu0 0
    %821 = vmatpush.bf16.msra.mxu0 0
    %822 = vmatpush.bf16.msra.mxu0 0
    %823 = vmatpush.bf16.msra.mxu0 0
    %824 = vmatpush.bf16.msra.mxu0 0
    %825 = vmatpush.bf16.msra.mxu0 0
    %826 = vmatpush.bf16.msra.mxu0 %v817
    %827 = vmatmul.bf16.gmra.mxu0 %v814
    %v828 = vpop.f32.mrf.mxu0
    %v829 = vadd.f32 0.0, %v828
    %v830 = vpop.f32.mrf.mxu0
    %831 = vdwg.mxu0
    %832 = vrot.lane.b32.xlu0 %v155, 104
    %v833 = vpop.permute.xlu0 %832
    %834 = vrot.lane.b32.xlu0 %v155, 72
    %v835 = vpop.permute.xlu0 %834
    %v837 = vsel %vm158, %v833, 0
    %v840 = vsel %vm158, %v835, 0
    %842 = vmatpush.bf16.xpose.msra.mxu0 0
    %843 = vmatpush.bf16.xpose.msra.mxu0 0
    %844 = vmatpush.bf16.xpose.msra.mxu0 0
    %845 = vmatpush.bf16.xpose.msra.mxu0 0
    %846 = vmatpush.bf16.xpose.msra.mxu0 0
    %847 = vmatpush.bf16.xpose.msra.mxu0 0
    %848 = vmatpush.bf16.xpose.msra.mxu0 0
    %849 = vmatpush.bf16.xpose.msra.mxu0 %v840
    %850 = vmatmul.bf16.gmra.mxu0 %v837
    %v851 = vpop.f32.mrf.mxu0
    %v852 = vadd.f32 %v149, %v851
    %v853 = vpop.f32.mrf.mxu0
    %854 = vdwg.mxu0
    %855 = vrot.lane.b32.xlu0 %v180, 104
    %v856 = vpop.permute.xlu0 %855
    %857 = vrot.lane.b32.xlu0 %v180, 72
    %v858 = vpop.permute.xlu0 %857
    %v860 = vsel %vm158, %v856, 0
    %v863 = vsel %vm158, %v858, 0
    %865 = vmatpush.bf16.xpose.msra.mxu0 0
    %866 = vmatpush.bf16.xpose.msra.mxu0 0
    %867 = vmatpush.bf16.xpose.msra.mxu0 0
    %868 = vmatpush.bf16.xpose.msra.mxu0 0
    %869 = vmatpush.bf16.xpose.msra.mxu0 0
    %870 = vmatpush.bf16.xpose.msra.mxu0 0
    %871 = vmatpush.bf16.xpose.msra.mxu0 0
    %872 = vmatpush.bf16.xpose.msra.mxu0 %v863
    %873 = vmatmul.bf16.gmra.mxu0 %v860
    %v874 = vpop.f32.mrf.mxu0
    %v875 = vadd.f32 %v150, %v874
    %v876 = vpop.f32.mrf.mxu0
    %877 = vdwg.mxu0
    %v878 = vsel %vm202, %v852, -inf
    %879 = vmax.xlane.f32.xlu0 %v878
    %v880 = vpop.xlane.xlu0 %879
    %v881 = vsel %vm202, %v875, -inf
    %882 = vmax.xlane.f32.xlu0 %v881
    %v883 = vpop.xlane.xlu0 %882
    %v884 = vsub.f32 %v852, %v880
    %v885 = vsub.f32 %v875, %v883
    %v886 = vmul.f32 %v884, 1.442695
    %v887 = vpow.pop %v886
    %v888 = vmul.f32 %v885, 1.442695
    %v889 = vpow.pop %v888
    %v890 = vsel %vm202, %v887, 0.0
    %891 = vadd.xlane.f32.xlu0 %v890
    %v892 = vpop.xlane.xlu0 %891
    %v893 = vsel %vm202, %v889, 0.0
    %894 = vadd.xlane.f32.xlu0 %v893
    %v895 = vpop.xlane.xlu0 %894
    %v896 = vrcp.pop %v892
    %v897 = vrcp.pop %v895
    %v898 = vmul.f32 %v887, %v896
    %v899 = vmul.f32 %v889, %v897
    %v900 = vpack.c.bf16 %v898, %v898
    %v901 = vpack.c.bf16 %v899, %v899
    %902 = vrot.lane.b32.xlu0 %v338, 104
    %v903 = vpop.permute.xlu0 %902
    %v905 = vsel %vm202, %v900, 0
    %v908 = vsel %vm230, %v903, 0
    %910 = vmatpush.bf16.msra.mxu0 0
    %911 = vmatpush.bf16.msra.mxu0 0
    %912 = vmatpush.bf16.msra.mxu0 0
    %913 = vmatpush.bf16.msra.mxu0 0
    %914 = vmatpush.bf16.msra.mxu0 0
    %915 = vmatpush.bf16.msra.mxu0 0
    %916 = vmatpush.bf16.msra.mxu0 0
    %917 = vmatpush.bf16.msra.mxu0 %v908
    %918 = vmatmul.bf16.gmra.mxu0 %v905
    %v919 = vpop.f32.mrf.mxu0
    %v920 = vadd.f32 0.0, %v919
    %v921 = vpop.f32.mrf.mxu0
    %922 = vdwg.mxu0
    %923 = vrot.lane.b32.xlu0 %v362, 104
    %v924 = vpop.permute.xlu0 %923
    %v926 = vsel %vm202, %v901, 0
    %v929 = vsel %vm230, %v924, 0
    %931 = vmatpush.bf16.msra.mxu0 0
    %932 = vmatpush.bf16.msra.mxu0 0
    %933 = vmatpush.bf16.msra.mxu0 0
    %934 = vmatpush.bf16.msra.mxu0 0
    %935 = vmatpush.bf16.msra.mxu0 0
    %936 = vmatpush.bf16.msra.mxu0 0
    %937 = vmatpush.bf16.msra.mxu0 0
    %938 = vmatpush.bf16.msra.mxu0 %v929
    %939 = vmatmul.bf16.gmra.mxu0 %v926
    %v940 = vpop.f32.mrf.mxu0
    %v941 = vadd.f32 0.0, %v940
    %v942 = vpop.f32.mrf.mxu0
    %943 = vdwg.mxu0
    %944 = vrot.lane.b32.xlu0 %v155, 100
    %v945 = vpop.permute.xlu0 %944
    %946 = vrot.lane.b32.xlu0 %v155, 68
    %v947 = vpop.permute.xlu0 %946
    %v949 = vsel %vm158, %v945, 0
    %v952 = vsel %vm158, %v947, 0
    %954 = vmatpush.bf16.xpose.msra.mxu0 0
    %955 = vmatpush.bf16.xpose.msra.mxu0 0
    %956 = vmatpush.bf16.xpose.msra.mxu0 0
    %957 = vmatpush.bf16.xpose.msra.mxu0 0
    %958 = vmatpush.bf16.xpose.msra.mxu0 0
    %959 = vmatpush.bf16.xpose.msra.mxu0 0
    %960 = vmatpush.bf16.xpose.msra.mxu0 0
    %961 = vmatpush.bf16.xpose.msra.mxu0 %v952
    %962 = vmatmul.bf16.gmra.mxu0 %v949
    %v963 = vpop.f32.mrf.mxu0
    %v964 = vadd.f32 %v149, %v963
    %v965 = vpop.f32.mrf.mxu0
    %966 = vdwg.mxu0
    %967 = vrot.lane.b32.xlu0 %v180, 100
    %v968 = vpop.permute.xlu0 %967
    %969 = vrot.lane.b32.xlu0 %v180, 68
    %v970 = vpop.permute.xlu0 %969
    %v972 = vsel %vm158, %v968, 0
    %v975 = vsel %vm158, %v970, 0
    %977 = vmatpush.bf16.xpose.msra.mxu0 0
    %978 = vmatpush.bf16.xpose.msra.mxu0 0
    %979 = vmatpush.bf16.xpose.msra.mxu0 0
    %980 = vmatpush.bf16.xpose.msra.mxu0 0
    %981 = vmatpush.bf16.xpose.msra.mxu0 0
    %982 = vmatpush.bf16.xpose.msra.mxu0 0
    %983 = vmatpush.bf16.xpose.msra.mxu0 0
    %984 = vmatpush.bf16.xpose.msra.mxu0 %v975
    %985 = vmatmul.bf16.gmra.mxu0 %v972
    %v986 = vpop.f32.mrf.mxu0
    %v987 = vadd.f32 %v150, %v986
    %v988 = vpop.f32.mrf.mxu0
    %989 = vdwg.mxu0
    %v990 = vsel %vm202, %v964, -inf
    %991 = vmax.xlane.f32.xlu0 %v990
    %v992 = vpop.xlane.xlu0 %991
    %v993 = vsel %vm202, %v987, -inf
    %994 = vmax.xlane.f32.xlu0 %v993
    %v995 = vpop.xlane.xlu0 %994
    %v996 = vsub.f32 %v964, %v992
    %v997 = vsub.f32 %v987, %v995
    %v998 = vmul.f32 %v996, 1.442695
    %v999 = vpow.pop %v998
    %v1000 = vmul.f32 %v997, 1.442695
    %v1001 = vpow.pop %v1000
    %v1002 = vsel %vm202, %v999, 0.0
    %1003 = vadd.xlane.f32.xlu0 %v1002
    %v1004 = vpop.xlane.xlu0 %1003
    %v1005 = vsel %vm202, %v1001, 0.0
    %1006 = vadd.xlane.f32.xlu0 %v1005
    %v1007 = vpop.xlane.xlu0 %1006
    %v1008 = vrcp.pop %v1004
    %v1009 = vrcp.pop %v1007
    %v1010 = vmul.f32 %v999, %v1008
    %v1011 = vmul.f32 %v1001, %v1009
    %v1012 = vpack.c.bf16 %v1010, %v1010
    %v1013 = vpack.c.bf16 %v1011, %v1011
    %1014 = vrot.lane.b32.xlu0 %v338, 100
    %v1015 = vpop.permute.xlu0 %1014
    %v1017 = vsel %vm202, %v1012, 0
    %v1020 = vsel %vm230, %v1015, 0
    %1022 = vmatpush.bf16.msra.mxu0 0
    %1023 = vmatpush.bf16.msra.mxu0 0
    %1024 = vmatpush.bf16.msra.mxu0 0
    %1025 = vmatpush.bf16.msra.mxu0 0
    %1026 = vmatpush.bf16.msra.mxu0 0
    %1027 = vmatpush.bf16.msra.mxu0 0
    %1028 = vmatpush.bf16.msra.mxu0 0
    %1029 = vmatpush.bf16.msra.mxu0 %v1020
    %1030 = vmatmul.bf16.gmra.mxu0 %v1017
    %v1031 = vpop.f32.mrf.mxu0
    %v1032 = vadd.f32 0.0, %v1031
    %v1033 = vpop.f32.mrf.mxu0
    %1034 = vdwg.mxu0
    %1035 = vrot.lane.b32.xlu0 %v362, 100
    %v1036 = vpop.permute.xlu0 %1035
    %v1038 = vsel %vm202, %v1013, 0
    %v1041 = vsel %vm230, %v1036, 0
    %1043 = vmatpush.bf16.msra.mxu0 0
    %1044 = vmatpush.bf16.msra.mxu0 0
    %1045 = vmatpush.bf16.msra.mxu0 0
    %1046 = vmatpush.bf16.msra.mxu0 0
    %1047 = vmatpush.bf16.msra.mxu0 0
    %1048 = vmatpush.bf16.msra.mxu0 0
    %1049 = vmatpush.bf16.msra.mxu0 0
    %1050 = vmatpush.bf16.msra.mxu0 %v1041
    %1051 = vmatmul.bf16.gmra.mxu0 %v1038
    %v1052 = vpop.f32.mrf.mxu0
    %v1053 = vadd.f32 0.0, %v1052
    %v1054 = vpop.f32.mrf.mxu0
    %1055 = vdwg.mxu0
    %1058 = vrot.lane.b32.xlu0 %v357, 4
    %v1059 = vpop.permute.xlu0 %1058
    %1060 = vrot.lane.b32.xlu0 %v381, 4
    %v1061 = vpop.permute.xlu0 %1060
    %1066 = vrot.lane.b32.xlu0 %v472, 8
    %v1067 = vpop.permute.xlu0 %1066
    %1068 = vrot.lane.b32.xlu0 %v493, 8
    %v1069 = vpop.permute.xlu0 %1068
    %1074 = vrot.lane.b32.xlu0 %v584, 12
    %v1075 = vpop.permute.xlu0 %1074
    %1076 = vrot.lane.b32.xlu0 %v605, 12
    %v1077 = vpop.permute.xlu0 %1076
    %1082 = vrot.lane.b32.xlu0 %v696, 16
    %v1083 = vpop.permute.xlu0 %1082
    %1084 = vrot.lane.b32.xlu0 %v717, 16
    %v1085 = vpop.permute.xlu0 %1084
    %1090 = vrot.lane.b32.xlu0 %v808, 20
    %v1091 = vpop.permute.xlu0 %1090
    %1092 = vrot.lane.b32.xlu0 %v829, 20
    %v1093 = vpop.permute.xlu0 %1092
    %1098 = vrot.lane.b32.xlu0 %v920, 24
    %v1099 = vpop.permute.xlu0 %1098
    %1100 = vrot.lane.b32.xlu0 %v941, 24
    %v1101 = vpop.permute.xlu0 %1100
    %1106 = vrot.lane.b32.xlu0 %v1032, 28
    %v1107 = vpop.permute.xlu0 %1106
    %1108 = vrot.lane.b32.xlu0 %v1053, 28
    %v1109 = vpop.permute.xlu0 %1108
    %v1112 = vsel %vm158, %v244, %v1059
    %v1113 = vsel %vm158, %v263, %v1061
    %v1114 = vsel %vm202, %v1112, %v1067
    %v1115 = vsel %vm202, %v1113, %v1069
    %vm1116 = vcmask 97280
    %v1117 = vsel %vm1116, %v1114, %v1075
    %v1118 = vsel %vm1116, %v1115, %v1077
    %vm1119 = vcmask 130048
    %v1120 = vsel %vm1119, %v1117, %v1083
    %v1121 = vsel %vm1119, %v1118, %v1085
    %vm1122 = vcmask 162816
    %v1123 = vsel %vm1122, %v1120, %v1091
    %v1124 = vsel %vm1122, %v1121, %v1093
    %vm1125 = vcmask 195584
    %v1126 = vsel %vm1125, %v1123, %v1099
    %v1127 = vsel %vm1125, %v1124, %v1101
    %vm1128 = vcmask 228352
    %v1129 = vsel %vm1128, %v1126, %v1107
    %v1130 = vsel %vm1128, %v1127, %v1109
    %v1131 = vpack.c.bf16 %v1130, %v1129
    %v1132 = vld [vmem:[%s7] sm:$0xf]
    %v1133 = vld [vmem:[%s7 + $0x4] sm:$0xf]
    %v1134 = vld [vmem:[%s7 + $0x8] sm:$0xf]
    %v1135 = vld [vmem:[%s7 + $0xc] sm:$0xf]
    %v1136 = vld [vmem:[%s8] sm:$0x1]
    %v1138 = vperm.slane %v1136, 0
    %v1144 = vunpack.c.l.b16 %v1132
    %v1145 = vunpack.c.l.b16 %v1133
    %v1146 = vunpack.c.l.b16 %v1134
    %v1147 = vunpack.c.l.b16 %v1135
    %v1148 = vpack.c.b16 %v1145, %v1144
    %v1149 = vpack.c.b16 %v1147, %v1146
    %v1153 = vsel %vm85, %v1131, 0
    %1155 = vmatpush.bf16.msra.mxu0 0
    %1156 = vmatpush.bf16.msra.mxu0 0
    %1157 = vmatpush.bf16.msra.mxu0 0
    %1158 = vmatpush.bf16.msra.mxu0 0
    %1159 = vmatpush.bf16.msra.mxu0 0
    %1160 = vmatpush.bf16.msra.mxu0 0
    %1161 = vmatpush.bf16.msra.mxu0 %v1149
    %1162 = vmatpush.bf16.msra.mxu0 %v1148
    %1163 = vmatmul.bf16.gmra.mxu0 %v1153
    %v1164 = vpop.f32.mrf.mxu0
    %v1165 = vadd.f32 %v1138, %v1164
    %v1166 = vpop.f32.mrf.mxu0
    %v1167 = vadd.f32 %v1138, %v1166
    %1168 = vdwg.mxu0
    %v1169 = vadd.f32 %v58, %v1165
    %v1170 = vadd.f32 %v59, %v1167
    %v1171 = vsel %vm85, %v1169, 0.0
    %1172 = vadd.xlane.f32.xlu0 %v1171
    %v1173 = vpop.xlane.xlu0 %1172
    %v1174 = vsel %vm85, %v1170, 0.0
    %1175 = vadd.xlane.f32.xlu0 %v1174
    %v1176 = vpop.xlane.xlu0 %1175
    %v1177 = vrcp.pop 32.0
    %v1178 = vmul.f32 32.0, %v1177
    %v1179 = vsub.f32 1.0, %v1178
    %v1180 = vmul.f32 %v1177, %v1179
    %v1181 = vadd.f32 %v1177, %v1180
    %vm1182 = vweird.f32 %v1177
    %v1183 = vsel %vm1182, %v1177, %v1181
    %v1184 = vmul.f32 %v1173, %v1183
    %v1185 = vmul.f32 %v1176, %v1183
    %v1186 = vsub.f32 %v1169, %v1184
    %v1187 = vsub.f32 %v1170, %v1185
    %v1188 = vmul.f32 %v1186, %v1186
    %v1189 = vmul.f32 %v1187, %v1187
    %v1190 = vsel %vm85, %v1188, 0.0
    %1191 = vadd.xlane.f32.xlu0 %v1190
    %v1192 = vpop.xlane.xlu0 %1191
    %v1193 = vsel %vm85, %v1189, 0.0
    %1194 = vadd.xlane.f32.xlu0 %v1193
    %v1195 = vpop.xlane.xlu0 %1194
    %v1196 = vmul.f32 %v1192, %v1183
    %v1197 = vmul.f32 %v1195, %v1183
    %v1198 = vadd.f32 %v1196, 1e-05
    %v1199 = vadd.f32 %v1197, 1e-05
    %v1200 = vrsqrt.pop %v1198
    %v1201 = vmul.f32 %v1200, %v1198
    %v1202 = vmul.f32 %v1201, %v1200
    %v1203 = vmul.f32 0.5, %v1202
    %v1204 = vsub.f32 1.5, %v1203
    %v1205 = vmul.f32 %v1200, %v1204
    %vm1206 = vweird.f32 %v1198
    %vm1207 = vweird.f32 %v1200
    %vm1208 = vmor %vm1206, %vm1207
    %v1209 = vsel %vm1208, %v1200, %v1205
    %v1210 = vrsqrt.pop %v1199
    %v1211 = vmul.f32 %v1210, %v1199
    %v1212 = vmul.f32 %v1211, %v1210
    %v1213 = vmul.f32 0.5, %v1212
    %v1214 = vsub.f32 1.5, %v1213
    %v1215 = vmul.f32 %v1210, %v1214
    %vm1216 = vweird.f32 %v1199
    %vm1217 = vweird.f32 %v1210
    %vm1218 = vmor %vm1216, %vm1217
    %v1219 = vsel %vm1218, %v1210, %v1215
    %v1220 = vmul.f32 %v1186, %v1209
    %v1221 = vmul.f32 %v1187, %v1219
    %v1222 = vld [vmem:[%s9] sm:$0x1]
    %v1224 = vperm.slane %v1222, 0
    %v1226 = vmul.f32 %v1220, %v1224
    %v1227 = vmul.f32 %v1221, %v1224
    %v1228 = vld [vmem:[%s10] sm:$0x1]
    %v1230 = vperm.slane %v1228, 0
    %v1232 = vadd.f32 %v1226, %v1230
    %v1233 = vadd.f32 %v1227, %v1230
    %v1234 = vpack.c.bf16 %v1233, %v1232
    %v1235 = vld [vmem:[%s11] sm:$0xff]
    %v1236 = vld [vmem:[%s11 + $0x8] sm:$0xff]
    %v1237 = vld [vmem:[%s11 + $0x10] sm:$0xff]
    %v1238 = vld [vmem:[%s11 + $0x18] sm:$0xff]
    %v1239 = vld [vmem:[%s12] sm:$0x3]
    %v1241 = vperm.slane %v1239, 0
    %v1242 = vperm.slane %v1239, 1
    %v1249 = vunpack.c.l.b16 %v1235
    %v1250 = vunpack.c.h.b16 %v1235
    %v1251 = vunpack.c.l.b16 %v1236
    %v1252 = vunpack.c.h.b16 %v1236
    %v1253 = vunpack.c.l.b16 %v1237
    %v1254 = vunpack.c.h.b16 %v1237
    %v1255 = vunpack.c.l.b16 %v1238
    %v1256 = vunpack.c.h.b16 %v1238
    %v1257 = vpack.c.b16 %v1251, %v1249
    %v1258 = vpack.c.b16 %v1252, %v1250
    %v1259 = vpack.c.b16 %v1255, %v1253
    %v1260 = vpack.c.b16 %v1256, %v1254
    %v1266 = vsel %vm85, %v1234, 0
    %1268 = vmatpush.bf16.msra.mxu0 0
    %1269 = vmatpush.bf16.msra.mxu0 0
    %1270 = vmatpush.bf16.msra.mxu0 0
    %1271 = vmatpush.bf16.msra.mxu0 0
    %1272 = vmatpush.bf16.msra.mxu0 0
    %1273 = vmatpush.bf16.msra.mxu0 0
    %1274 = vmatpush.bf16.msra.mxu0 %v1259
    %1275 = vmatpush.bf16.msra.mxu0 %v1257
    %1276 = vmatmul.bf16.gmra.mxu0 %v1266
    %v1277 = vpop.f32.mrf.mxu0
    %v1278 = vadd.f32 %v1241, %v1277
    %v1279 = vpop.f32.mrf.mxu0
    %v1280 = vadd.f32 %v1241, %v1279
    %1281 = vdwg.mxu0
    %1282 = vmatpush.bf16.msra.mxu0 0
    %1283 = vmatpush.bf16.msra.mxu0 0
    %1284 = vmatpush.bf16.msra.mxu0 0
    %1285 = vmatpush.bf16.msra.mxu0 0
    %1286 = vmatpush.bf16.msra.mxu0 0
    %1287 = vmatpush.bf16.msra.mxu0 0
    %1288 = vmatpush.bf16.msra.mxu0 %v1260
    %1289 = vmatpush.bf16.msra.mxu0 %v1258
    %1290 = vmatmul.bf16.gmra.mxu0 %v1266
    %v1291 = vpop.f32.mrf.mxu0
    %v1292 = vadd.f32 %v1242, %v1291
    %v1293 = vpop.f32.mrf.mxu0
    %v1294 = vadd.f32 %v1242, %v1293
    %1295 = vdwg.mxu0
    %v1296 = vmax.f32 %v1278, 0.0
    %v1297 = vmax.f32 %v1292, 0.0
    %v1298 = vmax.f32 %v1280, 0.0
    %v1299 = vmax.f32 %v1294, 0.0
    %v1300 = vpack.c.bf16 %v1298, %v1296
    %v1301 = vpack.c.bf16 %v1299, %v1297
    %v1302 = vld [vmem:[%s13] sm:$0xf]
    %v1303 = vld [vmem:[%s13 + $0x4] sm:$0xf]
    %v1304 = vld [vmem:[%s13 + $0x8] sm:$0xf]
    %v1305 = vld [vmem:[%s13 + $0xc] sm:$0xf]
    %v1306 = vld [vmem:[%s13 + $0x10] sm:$0xf]
    %v1307 = vld [vmem:[%s13 + $0x14] sm:$0xf]
    %v1308 = vld [vmem:[%s13 + $0x18] sm:$0xf]
    %v1309 = vld [vmem:[%s13 + $0x1c] sm:$0xf]
    %v1310 = vld [vmem:[%s13 + $0x20] sm:$0xf]
    %v1311 = vld [vmem:[%s13 + $0x24] sm:$0xf]
    %v1312 = vld [vmem:[%s13 + $0x28] sm:$0xf]
    %v1313 = vld [vmem:[%s13 + $0x2c] sm:$0xf]
    %v1314 = vld [vmem:[%s13 + $0x30] sm:$0xf]
    %v1315 = vld [vmem:[%s13 + $0x34] sm:$0xf]
    %v1316 = vld [vmem:[%s13 + $0x38] sm:$0xf]
    %v1317 = vld [vmem:[%s13 + $0x3c] sm:$0xf]
    %v1318 = vld [vmem:[%s13 + $0x40] sm:$0xf]
    %v1319 = vld [vmem:[%s13 + $0x44] sm:$0xf]
    %v1320 = vld [vmem:[%s13 + $0x48] sm:$0xf]
    %v1321 = vld [vmem:[%s13 + $0x4c] sm:$0xf]
    %v1322 = vld [vmem:[%s13 + $0x50] sm:$0xf]
    %v1323 = vld [vmem:[%s13 + $0x54] sm:$0xf]
    %v1324 = vld [vmem:[%s13 + $0x58] sm:$0xf]
    %v1325 = vld [vmem:[%s13 + $0x5c] sm:$0xf]
    %v1326 = vld [vmem:[%s13 + $0x60] sm:$0xf]
    %v1327 = vld [vmem:[%s13 + $0x64] sm:$0xf]
    %v1328 = vld [vmem:[%s13 + $0x68] sm:$0xf]
    %v1329 = vld [vmem:[%s13 + $0x6c] sm:$0xf]
    %v1330 = vld [vmem:[%s13 + $0x70] sm:$0xf]
    %v1331 = vld [vmem:[%s13 + $0x74] sm:$0xf]
    %v1332 = vld [vmem:[%s13 + $0x78] sm:$0xf]
    %v1333 = vld [vmem:[%s13 + $0x7c] sm:$0xf]
    %v1334 = vld [vmem:[%s14] sm:$0x1]
    %v1336 = vperm.slane %v1334, 0
    %v1370 = vunpack.c.l.b16 %v1302
    %v1371 = vunpack.c.l.b16 %v1303
    %v1372 = vunpack.c.l.b16 %v1304
    %v1373 = vunpack.c.l.b16 %v1305
    %v1374 = vunpack.c.l.b16 %v1306
    %v1375 = vunpack.c.l.b16 %v1307
    %v1376 = vunpack.c.l.b16 %v1308
    %v1377 = vunpack.c.l.b16 %v1309
    %v1378 = vunpack.c.l.b16 %v1310
    %v1379 = vunpack.c.l.b16 %v1311
    %v1380 = vunpack.c.l.b16 %v1312
    %v1381 = vunpack.c.l.b16 %v1313
    %v1382 = vunpack.c.l.b16 %v1314
    %v1383 = vunpack.c.l.b16 %v1315
    %v1384 = vunpack.c.l.b16 %v1316
    %v1385 = vunpack.c.l.b16 %v1317
    %v1386 = vunpack.c.l.b16 %v1318
    %v1387 = vunpack.c.l.b16 %v1319
    %v1388 = vunpack.c.l.b16 %v1320
    %v1389 = vunpack.c.l.b16 %v1321
    %v1390 = vunpack.c.l.b16 %v1322
    %v1391 = vunpack.c.l.b16 %v1323
    %v1392 = vunpack.c.l.b16 %v1324
    %v1393 = vunpack.c.l.b16 %v1325
    %v1394 = vunpack.c.l.b16 %v1326
    %v1395 = vunpack.c.l.b16 %v1327
    %v1396 = vunpack.c.l.b16 %v1328
    %v1397 = vunpack.c.l.b16 %v1329
    %v1398 = vunpack.c.l.b16 %v1330
    %v1399 = vunpack.c.l.b16 %v1331
    %v1400 = vunpack.c.l.b16 %v1332
    %v1401 = vunpack.c.l.b16 %v1333
    %v1402 = vpack.c.b16 %v1371, %v1370
    %v1403 = vpack.c.b16 %v1373, %v1372
    %v1404 = vpack.c.b16 %v1375, %v1374
    %v1405 = vpack.c.b16 %v1377, %v1376
    %v1406 = vpack.c.b16 %v1379, %v1378
    %v1407 = vpack.c.b16 %v1381, %v1380
    %v1408 = vpack.c.b16 %v1383, %v1382
    %v1409 = vpack.c.b16 %v1385, %v1384
    %v1410 = vpack.c.b16 %v1387, %v1386
    %v1411 = vpack.c.b16 %v1389, %v1388
    %v1412 = vpack.c.b16 %v1391, %v1390
    %v1413 = vpack.c.b16 %v1393, %v1392
    %v1414 = vpack.c.b16 %v1395, %v1394
    %v1415 = vpack.c.b16 %v1397, %v1396
    %v1416 = vpack.c.b16 %v1399, %v1398
    %v1417 = vpack.c.b16 %v1401, %v1400
    %1434 = vmatpush.bf16.msra.mxu0 %v1409
    %1435 = vmatpush.bf16.msra.mxu0 %v1408
    %1436 = vmatpush.bf16.msra.mxu0 %v1407
    %1437 = vmatpush.bf16.msra.mxu0 %v1406
    %1438 = vmatpush.bf16.msra.mxu0 %v1405
    %1439 = vmatpush.bf16.msra.mxu0 %v1404
    %1440 = vmatpush.bf16.msra.mxu0 %v1403
    %1441 = vmatpush.bf16.msra.mxu0 %v1402
    %1442 = vmatmul.bf16.gmra.mxu0 %v1300
    %v1443 = vpop.f32.mrf.mxu0
    %v1444 = vadd.f32 %v1336, %v1443
    %v1445 = vpop.f32.mrf.mxu0
    %v1446 = vadd.f32 %v1336, %v1445
    %1447 = vdwg.mxu0
    %1448 = vmatpush.bf16.msra.mxu0 %v1417
    %1449 = vmatpush.bf16.msra.mxu0 %v1416
    %1450 = vmatpush.bf16.msra.mxu0 %v1415
    %1451 = vmatpush.bf16.msra.mxu0 %v1414
    %1452 = vmatpush.bf16.msra.mxu0 %v1413
    %1453 = vmatpush.bf16.msra.mxu0 %v1412
    %1454 = vmatpush.bf16.msra.mxu0 %v1411
    %1455 = vmatpush.bf16.msra.mxu0 %v1410
    %1456 = vmatmul.bf16.gmra.mxu0 %v1301
    %v1457 = vpop.f32.mrf.mxu0
    %v1458 = vadd.f32 %v1444, %v1457
    %v1459 = vpop.f32.mrf.mxu0
    %v1460 = vadd.f32 %v1446, %v1459
    %1461 = vdwg.mxu0
    %v1462 = vadd.f32 %v1232, %v1458
    %v1463 = vadd.f32 %v1233, %v1460
    %v1464 = vsel %vm85, %v1462, 0.0
    %1465 = vadd.xlane.f32.xlu0 %v1464
    %v1466 = vpop.xlane.xlu0 %1465
    %v1467 = vsel %vm85, %v1463, 0.0
    %1468 = vadd.xlane.f32.xlu0 %v1467
    %v1469 = vpop.xlane.xlu0 %1468
    %v1470 = vmul.f32 %v1466, %v1183
    %v1471 = vmul.f32 %v1469, %v1183
    %v1472 = vsub.f32 %v1462, %v1470
    %v1473 = vsub.f32 %v1463, %v1471
    %v1474 = vmul.f32 %v1472, %v1472
    %v1475 = vmul.f32 %v1473, %v1473
    %v1476 = vsel %vm85, %v1474, 0.0
    %1477 = vadd.xlane.f32.xlu0 %v1476
    %v1478 = vpop.xlane.xlu0 %1477
    %v1479 = vsel %vm85, %v1475, 0.0
    %1480 = vadd.xlane.f32.xlu0 %v1479
    %v1481 = vpop.xlane.xlu0 %1480
    %v1482 = vmul.f32 %v1478, %v1183
    %v1483 = vmul.f32 %v1481, %v1183
    %v1484 = vadd.f32 %v1482, 1e-05
    %v1485 = vadd.f32 %v1483, 1e-05
    %v1486 = vrsqrt.pop %v1484
    %v1487 = vmul.f32 %v1486, %v1484
    %v1488 = vmul.f32 %v1487, %v1486
    %v1489 = vmul.f32 0.5, %v1488
    %v1490 = vsub.f32 1.5, %v1489
    %v1491 = vmul.f32 %v1486, %v1490
    %vm1492 = vweird.f32 %v1484
    %vm1493 = vweird.f32 %v1486
    %vm1494 = vmor %vm1492, %vm1493
    %v1495 = vsel %vm1494, %v1486, %v1491
    %v1496 = vrsqrt.pop %v1485
    %v1497 = vmul.f32 %v1496, %v1485
    %v1498 = vmul.f32 %v1497, %v1496
    %v1499 = vmul.f32 0.5, %v1498
    %v1500 = vsub.f32 1.5, %v1499
    %v1501 = vmul.f32 %v1496, %v1500
    %vm1502 = vweird.f32 %v1485
    %vm1503 = vweird.f32 %v1496
    %vm1504 = vmor %vm1502, %vm1503
    %v1505 = vsel %vm1504, %v1496, %v1501
    %v1506 = vmul.f32 %v1472, %v1495
    %v1507 = vmul.f32 %v1473, %v1505
    %v1508 = vld [vmem:[%s15] sm:$0x1]
    %v1510 = vperm.slane %v1508, 0
    %v1512 = vmul.f32 %v1506, %v1510
    %v1513 = vmul.f32 %v1507, %v1510
    %v1514 = vld [vmem:[%s16] sm:$0x1]
    %v1516 = vperm.slane %v1514, 0
    %v1518 = vadd.f32 %v1512, %v1516
    %v1519 = vadd.f32 %v1513, %v1516
    %1520 = vst.msk [vmem:[#allocation2] sm:$0xff] %vm85, %v1518
    %1521 = vst.msk [vmem:[#allocation2 + $0x8] sm:$0xff] %vm85, %v1519
    // Predicated region
    $region70: #{tpu_custom_call.1} parent=1 // pred_check
      _
    $region71: #{tpu_custom_call.1} parent=1 // pred_check_branch
      %1523 = sbr.rel (0) target = $region73
    $region72: #{tpu_custom_call.1} parent=1 // pred_region
      %1525 = vsyncadd [#allocation3], 0
      %s1526 = sshll.u32 [#allocation2], 4
      %s1527 = int_to_ptr.vmem [resolvable:$true] %s1526
      %s1528 = sshll.u32 %s17, 4
      %s1529 = int_to_ptr.hbm [resolvable:$true] %s1528
      %1534 = dma.vmem_to_hbm [thread:$0]  %s1527, 256, %s1529, [#allocation3], 128, 128, 8
    $region73: #{tpu_custom_call.1} parent=1 // pred_fallthru
      _
    // Predicated region
    $region74: #{tpu_custom_call.1} parent=1 // pred_check
      _
    $region75: #{tpu_custom_call.1} parent=1 // pred_check_branch
      %1536 = sbr.rel (0) target = $region77
    $region76: #{tpu_custom_call.1} parent=1 // pred_region
      %1538 = dma.done [#allocation3], 256
    $region77: #{tpu_custom_call.1} parent=1 // pred_fallthru
      _
    %1539 = vsyncpa [#allocation3], 1

</llo_original>
